<compile_context>
chip_gen: v7x
topology: tpu7x:2x2x1
jax: 0.10.0
libtpu: 0.0.40
codegen_flags: <defaults>
</compile_context>

<pallas_src>
import functools

import numpy as np
import jax
import jax.numpy as jnp
from jax import lax
from jax.experimental import pallas as pl
from jax.experimental.pallas import tpu as pltpu

LANE = 128
SUB = 8


# ----------------------------------------------------------------------------
# Anchor generation (numpy parameter setup, same as Faster R-CNN)
# ----------------------------------------------------------------------------
def _whctrs(anchor):
    w = anchor[2] - anchor[0] + 1
    h = anchor[3] - anchor[1] + 1
    x_ctr = anchor[0] + 0.5 * (w - 1)
    y_ctr = anchor[1] + 0.5 * (h - 1)
    return w, h, x_ctr, y_ctr


def _mkanchors(ws, hs, x_ctr, y_ctr):
    ws = ws[:, None]
    hs = hs[:, None]
    return np.hstack((x_ctr - 0.5 * (ws - 1), y_ctr - 0.5 * (hs - 1),
                      x_ctr + 0.5 * (ws - 1), y_ctr + 0.5 * (hs - 1)))


def _ratio_enum(anchor, ratios):
    w, h, x_ctr, y_ctr = _whctrs(anchor)
    size = w * h
    size_ratios = size / ratios
    ws = np.round(np.sqrt(size_ratios))
    hs = np.round(ws * ratios)
    return _mkanchors(ws, hs, x_ctr, y_ctr)


def _scale_enum(anchor, scales):
    w, h, x_ctr, y_ctr = _whctrs(anchor)
    ws = w * scales
    hs = h * scales
    return _mkanchors(ws, hs, x_ctr, y_ctr)


def generate_anchors(base_size=16, ratios=np.array([0.5, 1, 2]),
                     scales=np.array([8, 16, 32])):
    base_anchor = np.array([1, 1, base_size, base_size], dtype=np.float64) - 1
    ratio_anchors = _ratio_enum(base_anchor, ratios)
    return np.vstack([_scale_enum(ratio_anchors[i, :], scales)
                      for i in range(ratio_anchors.shape[0])])


def _cdiv(a, b):
    return -(-a // b)


# ----------------------------------------------------------------------------
# Generation-aware tiling plan (review items 4/5/6/7).
# Per-step block bytes (double-buffered) are bounded by a VMEM budget derived
# from the chip's capacity; tile counts > 1 are rounded to an even number so
# the "parallel" grid axis balances across v7x's two TensorCores.
# ----------------------------------------------------------------------------
def _plan_tiles(pre_n, batch):
    rows = _cdiv(_cdiv(pre_n, LANE), SUB) * SUB
    bytes_per_row = batch * LANE * 4 * 9          # idx(1) + deltas(4) + out(4)
    vmem_cap = 64 * 1024 * 1024
    try:
        info = pltpu.get_tpu_info()
        vmem_cap = int(getattr(info, "vmem_capacity_bytes", vmem_cap)) or vmem_cap
    except Exception:
        pass
    budget = min(vmem_cap // 4, 28 * 1024 * 1024)  # double-buffered working set
    cap_rows = max(SUB, min(1024, (budget // (2 * bytes_per_row)) // SUB * SUB))
    if rows <= cap_rows:
        num_tiles, tr = 1, rows
    else:
        num_tiles = _cdiv(rows, cap_rows)
        if num_tiles % 2:
            num_tiles += 1                         # even split for v7x megacore
        tr = _cdiv(_cdiv(rows, num_tiles), SUB) * SUB
    step_bytes = 2 * tr * bytes_per_row
    if step_bytes > (12 << 20):
        vmem_limit = int(min(vmem_cap * 3 // 4, step_bytes * 5 // 4 + (2 << 20)))
    else:
        vmem_limit = None                          # default scoped limit is plenty
    return tr, num_tiles, vmem_limit


# ----------------------------------------------------------------------------
# Pallas kernel 1: bbox decode + clip for the selected (top-k) anchors.
# Anchor geometry is rebuilt in-kernel from the anchor index plane and a small
# SMEM base-anchor table — no anchor-geometry HBM stream (review item 3).
# ----------------------------------------------------------------------------
def _decode_clip_kernel(im_info_ref, base_ref, idx_ref, dlt_ref, out_ref, *,
                        hw_size, w_size, feat_stride, num_base):
    inv_hw = 1.0 / float(hw_size)
    inv_w = 1.0 / float(w_size)
    B = dlt_ref.shape[0]
    for b in range(B):  # B small & static -> unrolled; planes re-read per b
        # Selected anchor index k = a*HW + (h*W + w).  Decompose with exact
        # f32 floor-division (values << 2^23, +0.5 guards rounding).
        k = idx_ref[b].astype(jnp.float32)
        a = jnp.floor((k + 0.5) * inv_hw)
        hw = k - a * float(hw_size)
        row = jnp.floor((hw + 0.5) * inv_w)
        col = hw - row * float(w_size)

        # Base-anchor table lookup via an unrolled select chain (A is tiny).
        widths = jnp.zeros_like(k)
        heights = jnp.zeros_like(k)
        bcx = jnp.zeros_like(k)
        bcy = jnp.zeros_like(k)
        for a_s in range(num_base):
            m = a == float(a_s)
            widths = jnp.where(m, base_ref[0, a_s], widths)
            heights = jnp.where(m, base_ref[1, a_s], heights)
            bcx = jnp.where(m, base_ref[2, a_s], bcx)
            bcy = jnp.where(m, base_ref[3, a_s], bcy)
        ctr_x = bcx + col * feat_stride
        ctr_y = bcy + row * feat_stride

        dx = dlt_ref[b, 0]
        dy = dlt_ref[b, 1]
        dw = dlt_ref[b, 2]
        dh = dlt_ref[b, 3]

        pred_ctr_x = dx * widths + ctr_x
        pred_ctr_y = dy * heights + ctr_y
        half_w = 0.5 * (jnp.exp(dw) * widths)
        half_h = 0.5 * (jnp.exp(dh) * heights)

        max_x = im_info_ref[b, 1] - 1.0
        max_y = im_info_ref[b, 0] - 1.0

        # Full-width (tr, 128) unmasked stores, one per coordinate plane.
        out_ref[b, 0] = jnp.clip(pred_ctr_x - half_w, 0.0, max_x)
        out_ref[b, 1] = jnp.clip(pred_ctr_y - half_h, 0.0, max_y)
        out_ref[b, 2] = jnp.clip(pred_ctr_x + half_w, 0.0, max_x)
        out_ref[b, 3] = jnp.clip(pred_ctr_y + half_h, 0.0, max_y)


def decode_and_clip_topk(idx_planes, deltas_planes, im_info, base_tab, tr, *,
                         hw_size, w_size, feat_stride, vmem_limit):
    B, _, R, L = deltas_planes.shape
    num_tiles = R // tr
    kernel = functools.partial(_decode_clip_kernel,
                               hw_size=hw_size, w_size=w_size,
                               feat_stride=float(feat_stride),
                               num_base=int(base_tab.shape[1]))
    return pl.pallas_call(
        kernel,
        out_shape=jax.ShapeDtypeStruct((B, 4, R, L), jnp.float32),
        grid=(num_tiles,),
        in_specs=[
            pl.BlockSpec(memory_space=pltpu.MemorySpace.SMEM),        # im_info
            pl.BlockSpec(memory_space=pltpu.MemorySpace.SMEM),        # base anchors
            pl.BlockSpec((B, tr, L), lambda r: (0, r, 0)),            # anchor ids
            pl.BlockSpec((B, 4, tr, L), lambda r: (0, 0, r, 0)),      # deltas
        ],
        out_specs=pl.BlockSpec((B, 4, tr, L), lambda r: (0, 0, r, 0)),
        compiler_params=pltpu.CompilerParams(
            dimension_semantics=("parallel",),
            vmem_limit_bytes=vmem_limit),
    )(im_info, base_tab, idx_planes, deltas_planes)


# ----------------------------------------------------------------------------
# Pallas kernel 2: greedy NMS keep-mask (serial candidate loop in-kernel).
# Boxes arrive twice: as lane-dense VMEM planes for the vectorised IoU math and
# as a (B*4, n_pad) SMEM copy for scalar reads of the current candidate box.
# The evolving keep mask lives in the output block; the keep[i] gate is read
# back with a one-hot masked reduce (no scalar extraction from VMEM needed).
# ----------------------------------------------------------------------------
def _nms_kernel(boxes_smem_ref, boxes_ref, keep_ref, areas_ref, *,
                n_valid, nms_thresh):
    b = pl.program_id(0)
    rows = areas_ref.shape[0]

    def flat_idx():
        r = lax.broadcasted_iota(jnp.int32, (rows, LANE), 0)
        l = lax.broadcasted_iota(jnp.int32, (rows, LANE), 1)
        return r * LANE + l

    x1 = boxes_ref[0, 0]
    y1 = boxes_ref[0, 1]
    x2 = boxes_ref[0, 2]
    y2 = boxes_ref[0, 3]
    areas_ref[...] = (x2 - x1 + 1.0) * (y2 - y1 + 1.0)
    keep_ref[0] = jnp.where(flat_idx() < n_valid, 1.0, 0.0)

    @pl.loop(0, n_valid)
    def _(i):
        xi1 = boxes_smem_ref[b * 4 + 0, i]
        yi1 = boxes_smem_ref[b * 4 + 1, i]
        xi2 = boxes_smem_ref[b * 4 + 2, i]
        yi2 = boxes_smem_ref[b * 4 + 3, i]
        area_i = (xi2 - xi1 + 1.0) * (yi2 - yi1 + 1.0)

        idx = flat_idx()
        # gate = keep[i] as a (1,1) value; suppression applied multiplicatively
        # so the loop body is branch-free.
        sel = jnp.where(idx == i, keep_ref[0], 0.0)
        gate = jnp.sum(jnp.sum(sel, axis=1, keepdims=True),
                       axis=0, keepdims=True)

        xx1 = jnp.maximum(xi1, boxes_ref[0, 0])
        yy1 = jnp.maximum(yi1, boxes_ref[0, 1])
        xx2 = jnp.minimum(xi2, boxes_ref[0, 2])
        yy2 = jnp.minimum(yi2, boxes_ref[0, 3])
        w = jnp.maximum(xx2 - xx1 + 1.0, 0.0)
        h = jnp.maximum(yy2 - yy1 + 1.0, 0.0)
        inter = w * h
        iou = inter / (area_i + areas_ref[...] - inter)
        sup = jnp.where((iou > nms_thresh) & (idx > i), 1.0, 0.0)
        keep_ref[0] = keep_ref[0] * (1.0 - gate * sup)


def nms_keep_mask(proposals_planes, pre_n, nms_thresh):
    B, _, R, L = proposals_planes.shape
    n_pad = R * L
    boxes_smem = proposals_planes.reshape(B * 4, n_pad)  # long axis last (SMEM)
    kernel = functools.partial(_nms_kernel, n_valid=int(pre_n),
                               nms_thresh=float(nms_thresh))
    keep = pl.pallas_call(
        kernel,
        out_shape=jax.ShapeDtypeStruct((B, R, L), jnp.float32),
        grid=(B,),
        in_specs=[
            pl.BlockSpec(memory_space=pltpu.MemorySpace.SMEM),        # scalar copy
            pl.BlockSpec((1, 4, R, L), lambda b: (b, 0, 0, 0)),       # planes
        ],
        out_specs=pl.BlockSpec((1, R, L), lambda b: (b, 0, 0)),
        scratch_shapes=[pltpu.VMEM((R, L), jnp.float32)],
        compiler_params=pltpu.CompilerParams(
            dimension_semantics=("parallel",)),
    )(boxes_smem, proposals_planes)
    return keep.reshape(B, n_pad)[:, :pre_n]


# ----------------------------------------------------------------------------
# Full _ProposalLayer.forward equivalent
# ----------------------------------------------------------------------------
def proposal_layer_forward(cls_score, bbox_deltas, im_info, config,
                           anchors, feat_stride):
    B, _, A, H, W = cls_score.shape
    HW = H * W
    K = A * HW  # box ordering used throughout: k = a*HW + (h*W + w)

    post_nms_top_n = int(config['RPN_POST_NMS_TOP_N'])
    pre_nms_top_n = int(config['RPN_PRE_NMS_TOP_N'])
    nms_thresh = float(config['RPN_NMS_THRESH'])
    # TODO(synk): RPN_MIN_SIZE is read but not applied in the reference forward.

    pre_n = min(pre_nms_top_n, K) if pre_nms_top_n > 0 else K

    # ---- scores in native layout (no transpose), top-k BEFORE decode ----
    fg = cls_score[:, 1].reshape(B, K)
    _, order = lax.top_k(fg, pre_n)                       # (B, pre_n) int32

    # ---- gather only the selected deltas from the native (B, 4A, H, W)
    #      layout (channel = a*4 + c); no full-size transpose/pad ever. ----
    a_sel = order // HW
    hw_sel = order % HW
    coord = jnp.arange(4, dtype=order.dtype)
    flat_idx = (a_sel[:, None, :] * 4 + coord[None, :, None]) * HW \
        + hw_sel[:, None, :]                              # (B, 4, pre_n)
    deltas_flat = bbox_deltas.reshape(B, 4 * A * HW)
    deltas_sel = jnp.take_along_axis(deltas_flat,
                                     flat_idx.reshape(B, 4 * pre_n), axis=1)
    deltas_sel = deltas_sel.reshape(B, 4, pre_n).astype(jnp.float32)
    # TODO(synk): optional bf16 streaming of deltas_sel (halves the read stream)
    # skipped to keep reference numerics.

    # ---- lane-dense padding / tiling plan ----
    tr, num_tiles, vmem_limit = _plan_tiles(pre_n, B)
    R = tr * num_tiles
    n_pad = R * LANE
    pad = n_pad - pre_n
    deltas_planes = jnp.pad(deltas_sel, ((0, 0), (0, 0), (0, pad))) \
        .reshape(B, 4, R, LANE)
    idx_planes = jnp.pad(order, ((0, 0), (0, pad))).astype(jnp.int32) \
        .reshape(B, R, LANE)

    # ---- base-anchor table (4, A): widths / heights / ctr_x / ctr_y ----
    anchors = anchors.astype(jnp.float32)
    aw = anchors[:, 2] - anchors[:, 0] + 1.0
    ah = anchors[:, 3] - anchors[:, 1] + 1.0
    acx = anchors[:, 0] + 0.5 * aw
    acy = anchors[:, 1] + 0.5 * ah
    base_tab = jnp.stack([aw, ah, acx, acy], axis=0)      # (4, A)

    # ---- Pallas hot path 1: decode + clip (only the selected boxes) ----
    proposals_planes = decode_and_clip_topk(
        idx_planes, deltas_planes, im_info.astype(jnp.float32), base_tab, tr,
        hw_size=HW, w_size=W, feat_stride=feat_stride, vmem_limit=vmem_limit)

    # ---- Pallas hot path 2: greedy NMS keep mask ----
    keep_b = nms_keep_mask(proposals_planes, pre_n, nms_thresh) > 0.5

    # ---- compaction (kept boxes first, score order preserved) in XLA ----
    props = proposals_planes.reshape(B, 4, n_pad)[:, :, :pre_n]
    idxs = jnp.arange(pre_n, dtype=jnp.int32)
    rank = jnp.where(keep_b, idxs[None, :], pre_n + idxs[None, :])
    n_take = min(post_nms_top_n, pre_n)
    order2 = jnp.argsort(rank, axis=1)[:, :n_take]
    sel = jnp.take_along_axis(
        props, jnp.broadcast_to(order2[:, None, :], (B, 4, n_take)), axis=2)
    num_keep = jnp.sum(keep_b.astype(jnp.int32), axis=1)
    valid = jnp.arange(n_take)[None, :] < num_keep[:, None]
    boxes_out = jnp.where(valid[:, None, :], sel, 0.0)
    boxes_out = jnp.transpose(boxes_out, (0, 2, 1))       # (B, n_take, 4)
    if n_take < post_nms_top_n:
        boxes_out = jnp.pad(boxes_out,
                            ((0, 0), (0, post_nms_top_n - n_take), (0, 0)))

    batch_col = jnp.broadcast_to(
        jnp.arange(B, dtype=jnp.float32)[:, None, None],
        (B, post_nms_top_n, 1))
    return jnp.concatenate([batch_col, boxes_out], axis=2)  # (B, post_n, 5)


# ----------------------------------------------------------------------------
# Demo
# ----------------------------------------------------------------------------
if __name__ == "__main__":
    feat_stride = 16
    anchor_scales = [8, 16, 32]
    anchor_ratios = [0.5, 1, 2]
    anchors = jnp.asarray(
        generate_anchors(scales=np.array(anchor_scales),
                         ratios=np.array(anchor_ratios)), dtype=jnp.float32)
    A = anchors.shape[0]  # 9

    B, H, W = 2, 16, 16
    key = jax.random.PRNGKey(0)
    k1, k2 = jax.random.split(key)

    cls_score = jax.random.normal(k1, (B, 2, A, H, W), dtype=jnp.float32)
    bbox_deltas = 0.1 * jax.random.normal(k2, (B, 4 * A, H, W),
                                          dtype=jnp.float32)
    im_info = jnp.array([[H * feat_stride, W * feat_stride, 1.0],
                         [H * feat_stride, W * feat_stride, 1.0]],
                        dtype=jnp.float32)

    config = {'RPN_POST_NMS_TOP_N': 50,
              'RPN_PRE_NMS_TOP_N': 256,
              'RPN_NMS_THRESH': 0.7,
              'RPN_MIN_SIZE': 16}

    out = proposal_layer_forward(cls_score, bbox_deltas, im_info, config,
                                 anchors, feat_stride)
    out = jax.block_until_ready(out)
    assert out.shape == (B, config['RPN_POST_NMS_TOP_N'], 5)
    assert bool(jnp.all(jnp.isfinite(out)))
    print("KERNEL_OK")
</pallas_src>

<mosaic_0001>
module attributes {stable_mosaic.version = 11 : i64} {
  func.func @_decode_clip_kernel(%arg0: i32, %arg1: memref<2x3xf32, #tpu.memory_space<smem>>, %arg2: memref<4x9xf32, #tpu.memory_space<smem>>, %arg3: memref<2x8x128xi32, #tpu.memory_space<vmem>>, %arg4: memref<2x4x8x128xf32, #tpu.memory_space<vmem>>, %arg5: memref<2x4x8x128xf32, #tpu.memory_space<vmem>>) attributes {dimension_semantics = [#tpu.dimension_semantics<parallel>], iteration_bounds = array<i64: 1>, scalar_prefetch = 0 : i64, scratch_operands = 0 : i64, tpu.core_type = #tpu.core_type<tc>, window_params = [{transform_indices = @transform_0, window_bounds = array<i64: 2, 3>}, {transform_indices = @transform_1, window_bounds = array<i64: 4, 9>}, {transform_indices = @transform_2, window_bounds = array<i64: 2, 8, 128>}, {transform_indices = @transform_3, window_bounds = array<i64: 2, 4, 8, 128>}, {transform_indices = @transform_4, window_bounds = array<i64: 2, 4, 8, 128>}]} {
    %c0 = arith.constant 0 : index
    %c0_0 = arith.constant 0 : index
    %c0_1 = arith.constant 0 : index
    %0 = vector.load %arg3[%c0, %c0_0, %c0_1] : memref<2x8x128xi32, #tpu.memory_space<vmem>>, vector<1x8x128xi32>
    %1 = vector.shape_cast %0 : vector<1x8x128xi32> to vector<8x128xi32>
    %2 = arith.sitofp %1 : vector<8x128xi32> to vector<8x128xf32>
    %cst = arith.constant 5.000000e-01 : f32
    %3 = vector.broadcast %cst : f32 to vector<8x128xf32>
    %4 = arith.addf %2, %3 : vector<8x128xf32>
    %cst_2 = arith.constant 3.906250e-03 : f32
    %5 = vector.broadcast %cst_2 : f32 to vector<8x128xf32>
    %6 = arith.mulf %4, %5 : vector<8x128xf32>
    %7 = math.floor %6 : vector<8x128xf32>
    %cst_3 = arith.constant 2.560000e+02 : f32
    %8 = vector.broadcast %cst_3 : f32 to vector<8x128xf32>
    %9 = arith.mulf %7, %8 : vector<8x128xf32>
    %10 = arith.subf %2, %9 : vector<8x128xf32>
    %cst_4 = arith.constant 5.000000e-01 : f32
    %11 = vector.broadcast %cst_4 : f32 to vector<8x128xf32>
    %12 = arith.addf %10, %11 : vector<8x128xf32>
    %cst_5 = arith.constant 6.250000e-02 : f32
    %13 = vector.broadcast %cst_5 : f32 to vector<8x128xf32>
    %14 = arith.mulf %12, %13 : vector<8x128xf32>
    %15 = math.floor %14 : vector<8x128xf32>
    %cst_6 = arith.constant 1.600000e+01 : f32
    %16 = vector.broadcast %cst_6 : f32 to vector<8x128xf32>
    %17 = arith.mulf %15, %16 : vector<8x128xf32>
    %18 = arith.subf %10, %17 : vector<8x128xf32>
    %cst_7 = arith.constant 0.000000e+00 : f32
    %19 = vector.broadcast %cst_7 : f32 to vector<8x128xf32>
    %cst_8 = arith.constant 0.000000e+00 : f32
    %20 = vector.broadcast %cst_8 : f32 to vector<8x128xf32>
    %cst_9 = arith.constant 0.000000e+00 : f32
    %21 = vector.broadcast %cst_9 : f32 to vector<8x128xf32>
    %cst_10 = arith.constant 0.000000e+00 : f32
    %22 = vector.broadcast %cst_10 : f32 to vector<8x128xf32>
    %cst_11 = arith.constant 0.000000e+00 : f32
    %23 = vector.broadcast %cst_11 : f32 to vector<8x128xf32>
    %24 = arith.cmpf oeq, %7, %23 : vector<8x128xf32>
    %c0_12 = arith.constant 0 : index
    %c0_13 = arith.constant 0 : index
    %25 = memref.load %arg2[%c0_12, %c0_13] : memref<4x9xf32, #tpu.memory_space<smem>>
    %26 = vector.broadcast %25 : f32 to vector<8x128xf32>
    %27 = arith.select %24, %26, %19 : vector<8x128xi1>, vector<8x128xf32>
    %c1 = arith.constant 1 : index
    %c0_14 = arith.constant 0 : index
    %28 = memref.load %arg2[%c1, %c0_14] : memref<4x9xf32, #tpu.memory_space<smem>>
    %29 = vector.broadcast %28 : f32 to vector<8x128xf32>
    %30 = arith.select %24, %29, %20 : vector<8x128xi1>, vector<8x128xf32>
    %c2 = arith.constant 2 : index
    %c0_15 = arith.constant 0 : index
    %31 = memref.load %arg2[%c2, %c0_15] : memref<4x9xf32, #tpu.memory_space<smem>>
    %32 = vector.broadcast %31 : f32 to vector<8x128xf32>
    %33 = arith.select %24, %32, %21 : vector<8x128xi1>, vector<8x128xf32>
    %c3 = arith.constant 3 : index
    %c0_16 = arith.constant 0 : index
    %34 = memref.load %arg2[%c3, %c0_16] : memref<4x9xf32, #tpu.memory_space<smem>>
    %35 = vector.broadcast %34 : f32 to vector<8x128xf32>
    %36 = arith.select %24, %35, %22 : vector<8x128xi1>, vector<8x128xf32>
    %cst_17 = arith.constant 1.000000e+00 : f32
    %37 = vector.broadcast %cst_17 : f32 to vector<8x128xf32>
    %38 = arith.cmpf oeq, %7, %37 : vector<8x128xf32>
    %c0_18 = arith.constant 0 : index
    %c1_19 = arith.constant 1 : index
    %39 = memref.load %arg2[%c0_18, %c1_19] : memref<4x9xf32, #tpu.memory_space<smem>>
    %40 = vector.broadcast %39 : f32 to vector<8x128xf32>
    %41 = arith.select %38, %40, %27 : vector<8x128xi1>, vector<8x128xf32>
    %c1_20 = arith.constant 1 : index
    %c1_21 = arith.constant 1 : index
    %42 = memref.load %arg2[%c1_20, %c1_21] : memref<4x9xf32, #tpu.memory_space<smem>>
    %43 = vector.broadcast %42 : f32 to vector<8x128xf32>
    %44 = arith.select %38, %43, %30 : vector<8x128xi1>, vector<8x128xf32>
    %c2_22 = arith.constant 2 : index
    %c1_23 = arith.constant 1 : index
    %45 = memref.load %arg2[%c2_22, %c1_23] : memref<4x9xf32, #tpu.memory_space<smem>>
    %46 = vector.broadcast %45 : f32 to vector<8x128xf32>
    %47 = arith.select %38, %46, %33 : vector<8x128xi1>, vector<8x128xf32>
    %c3_24 = arith.constant 3 : index
    %c1_25 = arith.constant 1 : index
    %48 = memref.load %arg2[%c3_24, %c1_25] : memref<4x9xf32, #tpu.memory_space<smem>>
    %49 = vector.broadcast %48 : f32 to vector<8x128xf32>
    %50 = arith.select %38, %49, %36 : vector<8x128xi1>, vector<8x128xf32>
    %cst_26 = arith.constant 2.000000e+00 : f32
    %51 = vector.broadcast %cst_26 : f32 to vector<8x128xf32>
    %52 = arith.cmpf oeq, %7, %51 : vector<8x128xf32>
    %c0_27 = arith.constant 0 : index
    %c2_28 = arith.constant 2 : index
    %53 = memref.load %arg2[%c0_27, %c2_28] : memref<4x9xf32, #tpu.memory_space<smem>>
    %54 = vector.broadcast %53 : f32 to vector<8x128xf32>
    %55 = arith.select %52, %54, %41 : vector<8x128xi1>, vector<8x128xf32>
    %c1_29 = arith.constant 1 : index
    %c2_30 = arith.constant 2 : index
    %56 = memref.load %arg2[%c1_29, %c2_30] : memref<4x9xf32, #tpu.memory_space<smem>>
    %57 = vector.broadcast %56 : f32 to vector<8x128xf32>
    %58 = arith.select %52, %57, %44 : vector<8x128xi1>, vector<8x128xf32>
    %c2_31 = arith.constant 2 : index
    %c2_32 = arith.constant 2 : index
    %59 = memref.load %arg2[%c2_31, %c2_32] : memref<4x9xf32, #tpu.memory_space<smem>>
    %60 = vector.broadcast %59 : f32 to vector<8x128xf32>
    %61 = arith.select %52, %60, %47 : vector<8x128xi1>, vector<8x128xf32>
    %c3_33 = arith.constant 3 : index
    %c2_34 = arith.constant 2 : index
    %62 = memref.load %arg2[%c3_33, %c2_34] : memref<4x9xf32, #tpu.memory_space<smem>>
    %63 = vector.broadcast %62 : f32 to vector<8x128xf32>
    %64 = arith.select %52, %63, %50 : vector<8x128xi1>, vector<8x128xf32>
    %cst_35 = arith.constant 3.000000e+00 : f32
    %65 = vector.broadcast %cst_35 : f32 to vector<8x128xf32>
    %66 = arith.cmpf oeq, %7, %65 : vector<8x128xf32>
    %c0_36 = arith.constant 0 : index
    %c3_37 = arith.constant 3 : index
    %67 = memref.load %arg2[%c0_36, %c3_37] : memref<4x9xf32, #tpu.memory_space<smem>>
    %68 = vector.broadcast %67 : f32 to vector<8x128xf32>
    %69 = arith.select %66, %68, %55 : vector<8x128xi1>, vector<8x128xf32>
    %c1_38 = arith.constant 1 : index
    %c3_39 = arith.constant 3 : index
    %70 = memref.load %arg2[%c1_38, %c3_39] : memref<4x9xf32, #tpu.memory_space<smem>>
    %71 = vector.broadcast %70 : f32 to vector<8x128xf32>
    %72 = arith.select %66, %71, %58 : vector<8x128xi1>, vector<8x128xf32>
    %c2_40 = arith.constant 2 : index
    %c3_41 = arith.constant 3 : index
    %73 = memref.load %arg2[%c2_40, %c3_41] : memref<4x9xf32, #tpu.memory_space<smem>>
    %74 = vector.broadcast %73 : f32 to vector<8x128xf32>
    %75 = arith.select %66, %74, %61 : vector<8x128xi1>, vector<8x128xf32>
    %c3_42 = arith.constant 3 : index
    %c3_43 = arith.constant 3 : index
    %76 = memref.load %arg2[%c3_42, %c3_43] : memref<4x9xf32, #tpu.memory_space<smem>>
    %77 = vector.broadcast %76 : f32 to vector<8x128xf32>
    %78 = arith.select %66, %77, %64 : vector<8x128xi1>, vector<8x128xf32>
    %cst_44 = arith.constant 4.000000e+00 : f32
    %79 = vector.broadcast %cst_44 : f32 to vector<8x128xf32>
    %80 = arith.cmpf oeq, %7, %79 : vector<8x128xf32>
    %c0_45 = arith.constant 0 : index
    %c4 = arith.constant 4 : index
    %81 = memref.load %arg2[%c0_45, %c4] : memref<4x9xf32, #tpu.memory_space<smem>>
    %82 = vector.broadcast %81 : f32 to vector<8x128xf32>
    %83 = arith.select %80, %82, %69 : vector<8x128xi1>, vector<8x128xf32>
    %c1_46 = arith.constant 1 : index
    %c4_47 = arith.constant 4 : index
    %84 = memref.load %arg2[%c1_46, %c4_47] : memref<4x9xf32, #tpu.memory_space<smem>>
    %85 = vector.broadcast %84 : f32 to vector<8x128xf32>
    %86 = arith.select %80, %85, %72 : vector<8x128xi1>, vector<8x128xf32>
    %c2_48 = arith.constant 2 : index
    %c4_49 = arith.constant 4 : index
    %87 = memref.load %arg2[%c2_48, %c4_49] : memref<4x9xf32, #tpu.memory_space<smem>>
    %88 = vector.broadcast %87 : f32 to vector<8x128xf32>
    %89 = arith.select %80, %88, %75 : vector<8x128xi1>, vector<8x128xf32>
    %c3_50 = arith.constant 3 : index
    %c4_51 = arith.constant 4 : index
    %90 = memref.load %arg2[%c3_50, %c4_51] : memref<4x9xf32, #tpu.memory_space<smem>>
    %91 = vector.broadcast %90 : f32 to vector<8x128xf32>
    %92 = arith.select %80, %91, %78 : vector<8x128xi1>, vector<8x128xf32>
    %cst_52 = arith.constant 5.000000e+00 : f32
    %93 = vector.broadcast %cst_52 : f32 to vector<8x128xf32>
    %94 = arith.cmpf oeq, %7, %93 : vector<8x128xf32>
    %c0_53 = arith.constant 0 : index
    %c5 = arith.constant 5 : index
    %95 = memref.load %arg2[%c0_53, %c5] : memref<4x9xf32, #tpu.memory_space<smem>>
    %96 = vector.broadcast %95 : f32 to vector<8x128xf32>
    %97 = arith.select %94, %96, %83 : vector<8x128xi1>, vector<8x128xf32>
    %c1_54 = arith.constant 1 : index
    %c5_55 = arith.constant 5 : index
    %98 = memref.load %arg2[%c1_54, %c5_55] : memref<4x9xf32, #tpu.memory_space<smem>>
    %99 = vector.broadcast %98 : f32 to vector<8x128xf32>
    %100 = arith.select %94, %99, %86 : vector<8x128xi1>, vector<8x128xf32>
    %c2_56 = arith.constant 2 : index
    %c5_57 = arith.constant 5 : index
    %101 = memref.load %arg2[%c2_56, %c5_57] : memref<4x9xf32, #tpu.memory_space<smem>>
    %102 = vector.broadcast %101 : f32 to vector<8x128xf32>
    %103 = arith.select %94, %102, %89 : vector<8x128xi1>, vector<8x128xf32>
    %c3_58 = arith.constant 3 : index
    %c5_59 = arith.constant 5 : index
    %104 = memref.load %arg2[%c3_58, %c5_59] : memref<4x9xf32, #tpu.memory_space<smem>>
    %105 = vector.broadcast %104 : f32 to vector<8x128xf32>
    %106 = arith.select %94, %105, %92 : vector<8x128xi1>, vector<8x128xf32>
    %cst_60 = arith.constant 6.000000e+00 : f32
    %107 = vector.broadcast %cst_60 : f32 to vector<8x128xf32>
    %108 = arith.cmpf oeq, %7, %107 : vector<8x128xf32>
    %c0_61 = arith.constant 0 : index
    %c6 = arith.constant 6 : index
    %109 = memref.load %arg2[%c0_61, %c6] : memref<4x9xf32, #tpu.memory_space<smem>>
    %110 = vector.broadcast %109 : f32 to vector<8x128xf32>
    %111 = arith.select %108, %110, %97 : vector<8x128xi1>, vector<8x128xf32>
    %c1_62 = arith.constant 1 : index
    %c6_63 = arith.constant 6 : index
    %112 = memref.load %arg2[%c1_62, %c6_63] : memref<4x9xf32, #tpu.memory_space<smem>>
    %113 = vector.broadcast %112 : f32 to vector<8x128xf32>
    %114 = arith.select %108, %113, %100 : vector<8x128xi1>, vector<8x128xf32>
    %c2_64 = arith.constant 2 : index
    %c6_65 = arith.constant 6 : index
    %115 = memref.load %arg2[%c2_64, %c6_65] : memref<4x9xf32, #tpu.memory_space<smem>>
    %116 = vector.broadcast %115 : f32 to vector<8x128xf32>
    %117 = arith.select %108, %116, %103 : vector<8x128xi1>, vector<8x128xf32>
    %c3_66 = arith.constant 3 : index
    %c6_67 = arith.constant 6 : index
    %118 = memref.load %arg2[%c3_66, %c6_67] : memref<4x9xf32, #tpu.memory_space<smem>>
    %119 = vector.broadcast %118 : f32 to vector<8x128xf32>
    %120 = arith.select %108, %119, %106 : vector<8x128xi1>, vector<8x128xf32>
    %cst_68 = arith.constant 7.000000e+00 : f32
    %121 = vector.broadcast %cst_68 : f32 to vector<8x128xf32>
    %122 = arith.cmpf oeq, %7, %121 : vector<8x128xf32>
    %c0_69 = arith.constant 0 : index
    %c7 = arith.constant 7 : index
    %123 = memref.load %arg2[%c0_69, %c7] : memref<4x9xf32, #tpu.memory_space<smem>>
    %124 = vector.broadcast %123 : f32 to vector<8x128xf32>
    %125 = arith.select %122, %124, %111 : vector<8x128xi1>, vector<8x128xf32>
    %c1_70 = arith.constant 1 : index
    %c7_71 = arith.constant 7 : index
    %126 = memref.load %arg2[%c1_70, %c7_71] : memref<4x9xf32, #tpu.memory_space<smem>>
    %127 = vector.broadcast %126 : f32 to vector<8x128xf32>
    %128 = arith.select %122, %127, %114 : vector<8x128xi1>, vector<8x128xf32>
    %c2_72 = arith.constant 2 : index
    %c7_73 = arith.constant 7 : index
    %129 = memref.load %arg2[%c2_72, %c7_73] : memref<4x9xf32, #tpu.memory_space<smem>>
    %130 = vector.broadcast %129 : f32 to vector<8x128xf32>
    %131 = arith.select %122, %130, %117 : vector<8x128xi1>, vector<8x128xf32>
    %c3_74 = arith.constant 3 : index
    %c7_75 = arith.constant 7 : index
    %132 = memref.load %arg2[%c3_74, %c7_75] : memref<4x9xf32, #tpu.memory_space<smem>>
    %133 = vector.broadcast %132 : f32 to vector<8x128xf32>
    %134 = arith.select %122, %133, %120 : vector<8x128xi1>, vector<8x128xf32>
    %cst_76 = arith.constant 8.000000e+00 : f32
    %135 = vector.broadcast %cst_76 : f32 to vector<8x128xf32>
    %136 = arith.cmpf oeq, %7, %135 : vector<8x128xf32>
    %c0_77 = arith.constant 0 : index
    %c8 = arith.constant 8 : index
    %137 = memref.load %arg2[%c0_77, %c8] : memref<4x9xf32, #tpu.memory_space<smem>>
    %138 = vector.broadcast %137 : f32 to vector<8x128xf32>
    %139 = arith.select %136, %138, %125 : vector<8x128xi1>, vector<8x128xf32>
    %c1_78 = arith.constant 1 : index
    %c8_79 = arith.constant 8 : index
    %140 = memref.load %arg2[%c1_78, %c8_79] : memref<4x9xf32, #tpu.memory_space<smem>>
    %141 = vector.broadcast %140 : f32 to vector<8x128xf32>
    %142 = arith.select %136, %141, %128 : vector<8x128xi1>, vector<8x128xf32>
    %c2_80 = arith.constant 2 : index
    %c8_81 = arith.constant 8 : index
    %143 = memref.load %arg2[%c2_80, %c8_81] : memref<4x9xf32, #tpu.memory_space<smem>>
    %144 = vector.broadcast %143 : f32 to vector<8x128xf32>
    %145 = arith.select %136, %144, %131 : vector<8x128xi1>, vector<8x128xf32>
    %c3_82 = arith.constant 3 : index
    %c8_83 = arith.constant 8 : index
    %146 = memref.load %arg2[%c3_82, %c8_83] : memref<4x9xf32, #tpu.memory_space<smem>>
    %147 = vector.broadcast %146 : f32 to vector<8x128xf32>
    %148 = arith.select %136, %147, %134 : vector<8x128xi1>, vector<8x128xf32>
    %cst_84 = arith.constant 1.600000e+01 : f32
    %149 = vector.broadcast %cst_84 : f32 to vector<8x128xf32>
    %150 = arith.mulf %18, %149 : vector<8x128xf32>
    %151 = arith.addf %145, %150 : vector<8x128xf32>
    %cst_85 = arith.constant 1.600000e+01 : f32
    %152 = vector.broadcast %cst_85 : f32 to vector<8x128xf32>
    %153 = arith.mulf %15, %152 : vector<8x128xf32>
    %154 = arith.addf %148, %153 : vector<8x128xf32>
    %c0_86 = arith.constant 0 : index
    %c0_87 = arith.constant 0 : index
    %c0_88 = arith.constant 0 : index
    %c0_89 = arith.constant 0 : index
    %155 = vector.load %arg4[%c0_86, %c0_87, %c0_88, %c0_89] : memref<2x4x8x128xf32, #tpu.memory_space<vmem>>, vector<1x1x8x128xf32>
    %156 = vector.shape_cast %155 : vector<1x1x8x128xf32> to vector<8x128xf32>
    %c0_90 = arith.constant 0 : index
    %c1_91 = arith.constant 1 : index
    %c0_92 = arith.constant 0 : index
    %c0_93 = arith.constant 0 : index
    %157 = vector.load %arg4[%c0_90, %c1_91, %c0_92, %c0_93] : memref<2x4x8x128xf32, #tpu.memory_space<vmem>>, vector<1x1x8x128xf32>
    %158 = vector.shape_cast %157 : vector<1x1x8x128xf32> to vector<8x128xf32>
    %c0_94 = arith.constant 0 : index
    %c2_95 = arith.constant 2 : index
    %c0_96 = arith.constant 0 : index
    %c0_97 = arith.constant 0 : index
    %159 = vector.load %arg4[%c0_94, %c2_95, %c0_96, %c0_97] : memref<2x4x8x128xf32, #tpu.memory_space<vmem>>, vector<1x1x8x128xf32>
    %160 = vector.shape_cast %159 : vector<1x1x8x128xf32> to vector<8x128xf32>
    %c0_98 = arith.constant 0 : index
    %c3_99 = arith.constant 3 : index
    %c0_100 = arith.constant 0 : index
    %c0_101 = arith.constant 0 : index
    %161 = vector.load %arg4[%c0_98, %c3_99, %c0_100, %c0_101] : memref<2x4x8x128xf32, #tpu.memory_space<vmem>>, vector<1x1x8x128xf32>
    %162 = vector.shape_cast %161 : vector<1x1x8x128xf32> to vector<8x128xf32>
    %163 = arith.mulf %156, %139 : vector<8x128xf32>
    %164 = arith.addf %163, %151 : vector<8x128xf32>
    %165 = arith.mulf %158, %142 : vector<8x128xf32>
    %166 = arith.addf %165, %154 : vector<8x128xf32>
    %167 = math.exp %160 : vector<8x128xf32>
    %168 = arith.mulf %167, %139 : vector<8x128xf32>
    %cst_102 = arith.constant 5.000000e-01 : f32
    %169 = vector.broadcast %cst_102 : f32 to vector<8x128xf32>
    %170 = arith.mulf %169, %168 : vector<8x128xf32>
    %171 = math.exp %162 : vector<8x128xf32>
    %172 = arith.mulf %171, %142 : vector<8x128xf32>
    %cst_103 = arith.constant 5.000000e-01 : f32
    %173 = vector.broadcast %cst_103 : f32 to vector<8x128xf32>
    %174 = arith.mulf %173, %172 : vector<8x128xf32>
    %c0_104 = arith.constant 0 : index
    %c1_105 = arith.constant 1 : index
    %175 = memref.load %arg1[%c0_104, %c1_105] : memref<2x3xf32, #tpu.memory_space<smem>>
    %cst_106 = arith.constant 1.000000e+00 : f32
    %176 = arith.subf %175, %cst_106 : f32
    %c0_107 = arith.constant 0 : index
    %c0_108 = arith.constant 0 : index
    %177 = memref.load %arg1[%c0_107, %c0_108] : memref<2x3xf32, #tpu.memory_space<smem>>
    %cst_109 = arith.constant 1.000000e+00 : f32
    %178 = arith.subf %177, %cst_109 : f32
    %179 = arith.subf %164, %170 : vector<8x128xf32>
    %cst_110 = arith.constant 0.000000e+00 : f32
    %180 = vector.broadcast %cst_110 : f32 to vector<8x128xf32>
    %181 = arith.maximumf %180, %179 : vector<8x128xf32>
    %182 = vector.broadcast %176 : f32 to vector<8x128xf32>
    %183 = arith.minimumf %182, %181 : vector<8x128xf32>
    %c0_111 = arith.constant 0 : index
    %c0_112 = arith.constant 0 : index
    %c0_113 = arith.constant 0 : index
    %c0_114 = arith.constant 0 : index
    %184 = vector.load %arg5[%c0_111, %c0_112, %c0_113, %c0_114] : memref<2x4x8x128xf32, #tpu.memory_space<vmem>>, vector<1x1x8x128xf32>
    %185 = vector.shape_cast %184 : vector<1x1x8x128xf32> to vector<8x128xf32>
    %186 = vector.shape_cast %183 : vector<8x128xf32> to vector<1x1x8x128xf32>
    tpu.vector_store %arg5[%c0_111, %c0_112, %c0_113, %c0_114], %186 {strides = array<i32>} : memref<2x4x8x128xf32, #tpu.memory_space<vmem>>, vector<1x1x8x128xf32>,
    %187 = arith.subf %166, %174 : vector<8x128xf32>
    %cst_115 = arith.constant 0.000000e+00 : f32
    %188 = vector.broadcast %cst_115 : f32 to vector<8x128xf32>
    %189 = arith.maximumf %188, %187 : vector<8x128xf32>
    %190 = vector.broadcast %178 : f32 to vector<8x128xf32>
    %191 = arith.minimumf %190, %189 : vector<8x128xf32>
    %c0_116 = arith.constant 0 : index
    %c1_117 = arith.constant 1 : index
    %c0_118 = arith.constant 0 : index
    %c0_119 = arith.constant 0 : index
    %192 = vector.load %arg5[%c0_116, %c1_117, %c0_118, %c0_119] : memref<2x4x8x128xf32, #tpu.memory_space<vmem>>, vector<1x1x8x128xf32>
    %193 = vector.shape_cast %192 : vector<1x1x8x128xf32> to vector<8x128xf32>
    %194 = vector.shape_cast %191 : vector<8x128xf32> to vector<1x1x8x128xf32>
    tpu.vector_store %arg5[%c0_116, %c1_117, %c0_118, %c0_119], %194 {strides = array<i32>} : memref<2x4x8x128xf32, #tpu.memory_space<vmem>>, vector<1x1x8x128xf32>,
    %195 = arith.addf %164, %170 : vector<8x128xf32>
    %cst_120 = arith.constant 0.000000e+00 : f32
    %196 = vector.broadcast %cst_120 : f32 to vector<8x128xf32>
    %197 = arith.maximumf %196, %195 : vector<8x128xf32>
    %198 = vector.broadcast %176 : f32 to vector<8x128xf32>
    %199 = arith.minimumf %198, %197 : vector<8x128xf32>
    %c0_121 = arith.constant 0 : index
    %c2_122 = arith.constant 2 : index
    %c0_123 = arith.constant 0 : index
    %c0_124 = arith.constant 0 : index
    %200 = vector.load %arg5[%c0_121, %c2_122, %c0_123, %c0_124] : memref<2x4x8x128xf32, #tpu.memory_space<vmem>>, vector<1x1x8x128xf32>
    %201 = vector.shape_cast %200 : vector<1x1x8x128xf32> to vector<8x128xf32>
    %202 = vector.shape_cast %199 : vector<8x128xf32> to vector<1x1x8x128xf32>
    tpu.vector_store %arg5[%c0_121, %c2_122, %c0_123, %c0_124], %202 {strides = array<i32>} : memref<2x4x8x128xf32, #tpu.memory_space<vmem>>, vector<1x1x8x128xf32>,
    %203 = arith.addf %166, %174 : vector<8x128xf32>
    %cst_125 = arith.constant 0.000000e+00 : f32
    %204 = vector.broadcast %cst_125 : f32 to vector<8x128xf32>
    %205 = arith.maximumf %204, %203 : vector<8x128xf32>
    %206 = vector.broadcast %178 : f32 to vector<8x128xf32>
    %207 = arith.minimumf %206, %205 : vector<8x128xf32>
    %c0_126 = arith.constant 0 : index
    %c3_127 = arith.constant 3 : index
    %c0_128 = arith.constant 0 : index
    %c0_129 = arith.constant 0 : index
    %208 = vector.load %arg5[%c0_126, %c3_127, %c0_128, %c0_129] : memref<2x4x8x128xf32, #tpu.memory_space<vmem>>, vector<1x1x8x128xf32>
    %209 = vector.shape_cast %208 : vector<1x1x8x128xf32> to vector<8x128xf32>
    %210 = vector.shape_cast %207 : vector<8x128xf32> to vector<1x1x8x128xf32>
    tpu.vector_store %arg5[%c0_126, %c3_127, %c0_128, %c0_129], %210 {strides = array<i32>} : memref<2x4x8x128xf32, #tpu.memory_space<vmem>>, vector<1x1x8x128xf32>,
    %c1_130 = arith.constant 1 : index
    %c0_131 = arith.constant 0 : index
    %c0_132 = arith.constant 0 : index
    %211 = vector.load %arg3[%c1_130, %c0_131, %c0_132] : memref<2x8x128xi32, #tpu.memory_space<vmem>>, vector<1x8x128xi32>
    %212 = vector.shape_cast %211 : vector<1x8x128xi32> to vector<8x128xi32>
    %213 = arith.sitofp %212 : vector<8x128xi32> to vector<8x128xf32>
    %cst_133 = arith.constant 5.000000e-01 : f32
    %214 = vector.broadcast %cst_133 : f32 to vector<8x128xf32>
    %215 = arith.addf %213, %214 : vector<8x128xf32>
    %cst_134 = arith.constant 3.906250e-03 : f32
    %216 = vector.broadcast %cst_134 : f32 to vector<8x128xf32>
    %217 = arith.mulf %215, %216 : vector<8x128xf32>
    %218 = math.floor %217 : vector<8x128xf32>
    %cst_135 = arith.constant 2.560000e+02 : f32
    %219 = vector.broadcast %cst_135 : f32 to vector<8x128xf32>
    %220 = arith.mulf %218, %219 : vector<8x128xf32>
    %221 = arith.subf %213, %220 : vector<8x128xf32>
    %cst_136 = arith.constant 5.000000e-01 : f32
    %222 = vector.broadcast %cst_136 : f32 to vector<8x128xf32>
    %223 = arith.addf %221, %222 : vector<8x128xf32>
    %cst_137 = arith.constant 6.250000e-02 : f32
    %224 = vector.broadcast %cst_137 : f32 to vector<8x128xf32>
    %225 = arith.mulf %223, %224 : vector<8x128xf32>
    %226 = math.floor %225 : vector<8x128xf32>
    %cst_138 = arith.constant 1.600000e+01 : f32
    %227 = vector.broadcast %cst_138 : f32 to vector<8x128xf32>
    %228 = arith.mulf %226, %227 : vector<8x128xf32>
    %229 = arith.subf %221, %228 : vector<8x128xf32>
    %cst_139 = arith.constant 0.000000e+00 : f32
    %230 = vector.broadcast %cst_139 : f32 to vector<8x128xf32>
    %cst_140 = arith.constant 0.000000e+00 : f32
    %231 = vector.broadcast %cst_140 : f32 to vector<8x128xf32>
    %cst_141 = arith.constant 0.000000e+00 : f32
    %232 = vector.broadcast %cst_141 : f32 to vector<8x128xf32>
    %cst_142 = arith.constant 0.000000e+00 : f32
    %233 = vector.broadcast %cst_142 : f32 to vector<8x128xf32>
    %cst_143 = arith.constant 0.000000e+00 : f32
    %234 = vector.broadcast %cst_143 : f32 to vector<8x128xf32>
    %235 = arith.cmpf oeq, %218, %234 : vector<8x128xf32>
    %c0_144 = arith.constant 0 : index
    %c0_145 = arith.constant 0 : index
    %236 = memref.load %arg2[%c0_144, %c0_145] : memref<4x9xf32, #tpu.memory_space<smem>>
    %237 = vector.broadcast %236 : f32 to vector<8x128xf32>
    %238 = arith.select %235, %237, %230 : vector<8x128xi1>, vector<8x128xf32>
    %c1_146 = arith.constant 1 : index
    %c0_147 = arith.constant 0 : index
    %239 = memref.load %arg2[%c1_146, %c0_147] : memref<4x9xf32, #tpu.memory_space<smem>>
    %240 = vector.broadcast %239 : f32 to vector<8x128xf32>
    %241 = arith.select %235, %240, %231 : vector<8x128xi1>, vector<8x128xf32>
    %c2_148 = arith.constant 2 : index
    %c0_149 = arith.constant 0 : index
    %242 = memref.load %arg2[%c2_148, %c0_149] : memref<4x9xf32, #tpu.memory_space<smem>>
    %243 = vector.broadcast %242 : f32 to vector<8x128xf32>
    %244 = arith.select %235, %243, %232 : vector<8x128xi1>, vector<8x128xf32>
    %c3_150 = arith.constant 3 : index
    %c0_151 = arith.constant 0 : index
    %245 = memref.load %arg2[%c3_150, %c0_151] : memref<4x9xf32, #tpu.memory_space<smem>>
    %246 = vector.broadcast %245 : f32 to vector<8x128xf32>
    %247 = arith.select %235, %246, %233 : vector<8x128xi1>, vector<8x128xf32>
    %cst_152 = arith.constant 1.000000e+00 : f32
    %248 = vector.broadcast %cst_152 : f32 to vector<8x128xf32>
    %249 = arith.cmpf oeq, %218, %248 : vector<8x128xf32>
    %c0_153 = arith.constant 0 : index
    %c1_154 = arith.constant 1 : index
    %250 = memref.load %arg2[%c0_153, %c1_154] : memref<4x9xf32, #tpu.memory_space<smem>>
    %251 = vector.broadcast %250 : f32 to vector<8x128xf32>
    %252 = arith.select %249, %251, %238 : vector<8x128xi1>, vector<8x128xf32>
    %c1_155 = arith.constant 1 : index
    %c1_156 = arith.constant 1 : index
    %253 = memref.load %arg2[%c1_155, %c1_156] : memref<4x9xf32, #tpu.memory_space<smem>>
    %254 = vector.broadcast %253 : f32 to vector<8x128xf32>
    %255 = arith.select %249, %254, %241 : vector<8x128xi1>, vector<8x128xf32>
    %c2_157 = arith.constant 2 : index
    %c1_158 = arith.constant 1 : index
    %256 = memref.load %arg2[%c2_157, %c1_158] : memref<4x9xf32, #tpu.memory_space<smem>>
    %257 = vector.broadcast %256 : f32 to vector<8x128xf32>
    %258 = arith.select %249, %257, %244 : vector<8x128xi1>, vector<8x128xf32>
    %c3_159 = arith.constant 3 : index
    %c1_160 = arith.constant 1 : index
    %259 = memref.load %arg2[%c3_159, %c1_160] : memref<4x9xf32, #tpu.memory_space<smem>>
    %260 = vector.broadcast %259 : f32 to vector<8x128xf32>
    %261 = arith.select %249, %260, %247 : vector<8x128xi1>, vector<8x128xf32>
    %cst_161 = arith.constant 2.000000e+00 : f32
    %262 = vector.broadcast %cst_161 : f32 to vector<8x128xf32>
    %263 = arith.cmpf oeq, %218, %262 : vector<8x128xf32>
    %c0_162 = arith.constant 0 : index
    %c2_163 = arith.constant 2 : index
    %264 = memref.load %arg2[%c0_162, %c2_163] : memref<4x9xf32, #tpu.memory_space<smem>>
    %265 = vector.broadcast %264 : f32 to vector<8x128xf32>
    %266 = arith.select %263, %265, %252 : vector<8x128xi1>, vector<8x128xf32>
    %c1_164 = arith.constant 1 : index
    %c2_165 = arith.constant 2 : index
    %267 = memref.load %arg2[%c1_164, %c2_165] : memref<4x9xf32, #tpu.memory_space<smem>>
    %268 = vector.broadcast %267 : f32 to vector<8x128xf32>
    %269 = arith.select %263, %268, %255 : vector<8x128xi1>, vector<8x128xf32>
    %c2_166 = arith.constant 2 : index
    %c2_167 = arith.constant 2 : index
    %270 = memref.load %arg2[%c2_166, %c2_167] : memref<4x9xf32, #tpu.memory_space<smem>>
    %271 = vector.broadcast %270 : f32 to vector<8x128xf32>
    %272 = arith.select %263, %271, %258 : vector<8x128xi1>, vector<8x128xf32>
    %c3_168 = arith.constant 3 : index
    %c2_169 = arith.constant 2 : index
    %273 = memref.load %arg2[%c3_168, %c2_169] : memref<4x9xf32, #tpu.memory_space<smem>>
    %274 = vector.broadcast %273 : f32 to vector<8x128xf32>
    %275 = arith.select %263, %274, %261 : vector<8x128xi1>, vector<8x128xf32>
    %cst_170 = arith.constant 3.000000e+00 : f32
    %276 = vector.broadcast %cst_170 : f32 to vector<8x128xf32>
    %277 = arith.cmpf oeq, %218, %276 : vector<8x128xf32>
    %c0_171 = arith.constant 0 : index
    %c3_172 = arith.constant 3 : index
    %278 = memref.load %arg2[%c0_171, %c3_172] : memref<4x9xf32, #tpu.memory_space<smem>>
    %279 = vector.broadcast %278 : f32 to vector<8x128xf32>
    %280 = arith.select %277, %279, %266 : vector<8x128xi1>, vector<8x128xf32>
    %c1_173 = arith.constant 1 : index
    %c3_174 = arith.constant 3 : index
    %281 = memref.load %arg2[%c1_173, %c3_174] : memref<4x9xf32, #tpu.memory_space<smem>>
    %282 = vector.broadcast %281 : f32 to vector<8x128xf32>
    %283 = arith.select %277, %282, %269 : vector<8x128xi1>, vector<8x128xf32>
    %c2_175 = arith.constant 2 : index
    %c3_176 = arith.constant 3 : index
    %284 = memref.load %arg2[%c2_175, %c3_176] : memref<4x9xf32, #tpu.memory_space<smem>>
    %285 = vector.broadcast %284 : f32 to vector<8x128xf32>
    %286 = arith.select %277, %285, %272 : vector<8x128xi1>, vector<8x128xf32>
    %c3_177 = arith.constant 3 : index
    %c3_178 = arith.constant 3 : index
    %287 = memref.load %arg2[%c3_177, %c3_178] : memref<4x9xf32, #tpu.memory_space<smem>>
    %288 = vector.broadcast %287 : f32 to vector<8x128xf32>
    %289 = arith.select %277, %288, %275 : vector<8x128xi1>, vector<8x128xf32>
    %cst_179 = arith.constant 4.000000e+00 : f32
    %290 = vector.broadcast %cst_179 : f32 to vector<8x128xf32>
    %291 = arith.cmpf oeq, %218, %290 : vector<8x128xf32>
    %c0_180 = arith.constant 0 : index
    %c4_181 = arith.constant 4 : index
    %292 = memref.load %arg2[%c0_180, %c4_181] : memref<4x9xf32, #tpu.memory_space<smem>>
    %293 = vector.broadcast %292 : f32 to vector<8x128xf32>
    %294 = arith.select %291, %293, %280 : vector<8x128xi1>, vector<8x128xf32>
    %c1_182 = arith.constant 1 : index
    %c4_183 = arith.constant 4 : index
    %295 = memref.load %arg2[%c1_182, %c4_183] : memref<4x9xf32, #tpu.memory_space<smem>>
    %296 = vector.broadcast %295 : f32 to vector<8x128xf32>
    %297 = arith.select %291, %296, %283 : vector<8x128xi1>, vector<8x128xf32>
    %c2_184 = arith.constant 2 : index
    %c4_185 = arith.constant 4 : index
    %298 = memref.load %arg2[%c2_184, %c4_185] : memref<4x9xf32, #tpu.memory_space<smem>>
    %299 = vector.broadcast %298 : f32 to vector<8x128xf32>
    %300 = arith.select %291, %299, %286 : vector<8x128xi1>, vector<8x128xf32>
    %c3_186 = arith.constant 3 : index
    %c4_187 = arith.constant 4 : index
    %301 = memref.load %arg2[%c3_186, %c4_187] : memref<4x9xf32, #tpu.memory_space<smem>>
    %302 = vector.broadcast %301 : f32 to vector<8x128xf32>
    %303 = arith.select %291, %302, %289 : vector<8x128xi1>, vector<8x128xf32>
    %cst_188 = arith.constant 5.000000e+00 : f32
    %304 = vector.broadcast %cst_188 : f32 to vector<8x128xf32>
    %305 = arith.cmpf oeq, %218, %304 : vector<8x128xf32>
    %c0_189 = arith.constant 0 : index
    %c5_190 = arith.constant 5 : index
    %306 = memref.load %arg2[%c0_189, %c5_190] : memref<4x9xf32, #tpu.memory_space<smem>>
    %307 = vector.broadcast %306 : f32 to vector<8x128xf32>
    %308 = arith.select %305, %307, %294 : vector<8x128xi1>, vector<8x128xf32>
    %c1_191 = arith.constant 1 : index
    %c5_192 = arith.constant 5 : index
    %309 = memref.load %arg2[%c1_191, %c5_192] : memref<4x9xf32, #tpu.memory_space<smem>>
    %310 = vector.broadcast %309 : f32 to vector<8x128xf32>
    %311 = arith.select %305, %310, %297 : vector<8x128xi1>, vector<8x128xf32>
    %c2_193 = arith.constant 2 : index
    %c5_194 = arith.constant 5 : index
    %312 = memref.load %arg2[%c2_193, %c5_194] : memref<4x9xf32, #tpu.memory_space<smem>>
    %313 = vector.broadcast %312 : f32 to vector<8x128xf32>
    %314 = arith.select %305, %313, %300 : vector<8x128xi1>, vector<8x128xf32>
    %c3_195 = arith.constant 3 : index
    %c5_196 = arith.constant 5 : index
    %315 = memref.load %arg2[%c3_195, %c5_196] : memref<4x9xf32, #tpu.memory_space<smem>>
    %316 = vector.broadcast %315 : f32 to vector<8x128xf32>
    %317 = arith.select %305, %316, %303 : vector<8x128xi1>, vector<8x128xf32>
    %cst_197 = arith.constant 6.000000e+00 : f32
    %318 = vector.broadcast %cst_197 : f32 to vector<8x128xf32>
    %319 = arith.cmpf oeq, %218, %318 : vector<8x128xf32>
    %c0_198 = arith.constant 0 : index
    %c6_199 = arith.constant 6 : index
    %320 = memref.load %arg2[%c0_198, %c6_199] : memref<4x9xf32, #tpu.memory_space<smem>>
    %321 = vector.broadcast %320 : f32 to vector<8x128xf32>
    %322 = arith.select %319, %321, %308 : vector<8x128xi1>, vector<8x128xf32>
    %c1_200 = arith.constant 1 : index
    %c6_201 = arith.constant 6 : index
    %323 = memref.load %arg2[%c1_200, %c6_201] : memref<4x9xf32, #tpu.memory_space<smem>>
    %324 = vector.broadcast %323 : f32 to vector<8x128xf32>
    %325 = arith.select %319, %324, %311 : vector<8x128xi1>, vector<8x128xf32>
    %c2_202 = arith.constant 2 : index
    %c6_203 = arith.constant 6 : index
    %326 = memref.load %arg2[%c2_202, %c6_203] : memref<4x9xf32, #tpu.memory_space<smem>>
    %327 = vector.broadcast %326 : f32 to vector<8x128xf32>
    %328 = arith.select %319, %327, %314 : vector<8x128xi1>, vector<8x128xf32>
    %c3_204 = arith.constant 3 : index
    %c6_205 = arith.constant 6 : index
    %329 = memref.load %arg2[%c3_204, %c6_205] : memref<4x9xf32, #tpu.memory_space<smem>>
    %330 = vector.broadcast %329 : f32 to vector<8x128xf32>
    %331 = arith.select %319, %330, %317 : vector<8x128xi1>, vector<8x128xf32>
    %cst_206 = arith.constant 7.000000e+00 : f32
    %332 = vector.broadcast %cst_206 : f32 to vector<8x128xf32>
    %333 = arith.cmpf oeq, %218, %332 : vector<8x128xf32>
    %c0_207 = arith.constant 0 : index
    %c7_208 = arith.constant 7 : index
    %334 = memref.load %arg2[%c0_207, %c7_208] : memref<4x9xf32, #tpu.memory_space<smem>>
    %335 = vector.broadcast %334 : f32 to vector<8x128xf32>
    %336 = arith.select %333, %335, %322 : vector<8x128xi1>, vector<8x128xf32>
    %c1_209 = arith.constant 1 : index
    %c7_210 = arith.constant 7 : index
    %337 = memref.load %arg2[%c1_209, %c7_210] : memref<4x9xf32, #tpu.memory_space<smem>>
    %338 = vector.broadcast %337 : f32 to vector<8x128xf32>
    %339 = arith.select %333, %338, %325 : vector<8x128xi1>, vector<8x128xf32>
    %c2_211 = arith.constant 2 : index
    %c7_212 = arith.constant 7 : index
    %340 = memref.load %arg2[%c2_211, %c7_212] : memref<4x9xf32, #tpu.memory_space<smem>>
    %341 = vector.broadcast %340 : f32 to vector<8x128xf32>
    %342 = arith.select %333, %341, %328 : vector<8x128xi1>, vector<8x128xf32>
    %c3_213 = arith.constant 3 : index
    %c7_214 = arith.constant 7 : index
    %343 = memref.load %arg2[%c3_213, %c7_214] : memref<4x9xf32, #tpu.memory_space<smem>>
    %344 = vector.broadcast %343 : f32 to vector<8x128xf32>
    %345 = arith.select %333, %344, %331 : vector<8x128xi1>, vector<8x128xf32>
    %cst_215 = arith.constant 8.000000e+00 : f32
    %346 = vector.broadcast %cst_215 : f32 to vector<8x128xf32>
    %347 = arith.cmpf oeq, %218, %346 : vector<8x128xf32>
    %c0_216 = arith.constant 0 : index
    %c8_217 = arith.constant 8 : index
    %348 = memref.load %arg2[%c0_216, %c8_217] : memref<4x9xf32, #tpu.memory_space<smem>>
    %349 = vector.broadcast %348 : f32 to vector<8x128xf32>
    %350 = arith.select %347, %349, %336 : vector<8x128xi1>, vector<8x128xf32>
    %c1_218 = arith.constant 1 : index
    %c8_219 = arith.constant 8 : index
    %351 = memref.load %arg2[%c1_218, %c8_219] : memref<4x9xf32, #tpu.memory_space<smem>>
    %352 = vector.broadcast %351 : f32 to vector<8x128xf32>
    %353 = arith.select %347, %352, %339 : vector<8x128xi1>, vector<8x128xf32>
    %c2_220 = arith.constant 2 : index
    %c8_221 = arith.constant 8 : index
    %354 = memref.load %arg2[%c2_220, %c8_221] : memref<4x9xf32, #tpu.memory_space<smem>>
    %355 = vector.broadcast %354 : f32 to vector<8x128xf32>
    %356 = arith.select %347, %355, %342 : vector<8x128xi1>, vector<8x128xf32>
    %c3_222 = arith.constant 3 : index
    %c8_223 = arith.constant 8 : index
    %357 = memref.load %arg2[%c3_222, %c8_223] : memref<4x9xf32, #tpu.memory_space<smem>>
    %358 = vector.broadcast %357 : f32 to vector<8x128xf32>
    %359 = arith.select %347, %358, %345 : vector<8x128xi1>, vector<8x128xf32>
    %cst_224 = arith.constant 1.600000e+01 : f32
    %360 = vector.broadcast %cst_224 : f32 to vector<8x128xf32>
    %361 = arith.mulf %229, %360 : vector<8x128xf32>
    %362 = arith.addf %356, %361 : vector<8x128xf32>
    %cst_225 = arith.constant 1.600000e+01 : f32
    %363 = vector.broadcast %cst_225 : f32 to vector<8x128xf32>
    %364 = arith.mulf %226, %363 : vector<8x128xf32>
    %365 = arith.addf %359, %364 : vector<8x128xf32>
    %c1_226 = arith.constant 1 : index
    %c0_227 = arith.constant 0 : index
    %c0_228 = arith.constant 0 : index
    %c0_229 = arith.constant 0 : index
    %366 = vector.load %arg4[%c1_226, %c0_227, %c0_228, %c0_229] : memref<2x4x8x128xf32, #tpu.memory_space<vmem>>, vector<1x1x8x128xf32>
    %367 = vector.shape_cast %366 : vector<1x1x8x128xf32> to vector<8x128xf32>
    %c1_230 = arith.constant 1 : index
    %c1_231 = arith.constant 1 : index
    %c0_232 = arith.constant 0 : index
    %c0_233 = arith.constant 0 : index
    %368 = vector.load %arg4[%c1_230, %c1_231, %c0_232, %c0_233] : memref<2x4x8x128xf32, #tpu.memory_space<vmem>>, vector<1x1x8x128xf32>
    %369 = vector.shape_cast %368 : vector<1x1x8x128xf32> to vector<8x128xf32>
    %c1_234 = arith.constant 1 : index
    %c2_235 = arith.constant 2 : index
    %c0_236 = arith.constant 0 : index
    %c0_237 = arith.constant 0 : index
    %370 = vector.load %arg4[%c1_234, %c2_235, %c0_236, %c0_237] : memref<2x4x8x128xf32, #tpu.memory_space<vmem>>, vector<1x1x8x128xf32>
    %371 = vector.shape_cast %370 : vector<1x1x8x128xf32> to vector<8x128xf32>
    %c1_238 = arith.constant 1 : index
    %c3_239 = arith.constant 3 : index
    %c0_240 = arith.constant 0 : index
    %c0_241 = arith.constant 0 : index
    %372 = vector.load %arg4[%c1_238, %c3_239, %c0_240, %c0_241] : memref<2x4x8x128xf32, #tpu.memory_space<vmem>>, vector<1x1x8x128xf32>
    %373 = vector.shape_cast %372 : vector<1x1x8x128xf32> to vector<8x128xf32>
    %374 = arith.mulf %367, %350 : vector<8x128xf32>
    %375 = arith.addf %374, %362 : vector<8x128xf32>
    %376 = arith.mulf %369, %353 : vector<8x128xf32>
    %377 = arith.addf %376, %365 : vector<8x128xf32>
    %378 = math.exp %371 : vector<8x128xf32>
    %379 = arith.mulf %378, %350 : vector<8x128xf32>
    %cst_242 = arith.constant 5.000000e-01 : f32
    %380 = vector.broadcast %cst_242 : f32 to vector<8x128xf32>
    %381 = arith.mulf %380, %379 : vector<8x128xf32>
    %382 = math.exp %373 : vector<8x128xf32>
    %383 = arith.mulf %382, %353 : vector<8x128xf32>
    %cst_243 = arith.constant 5.000000e-01 : f32
    %384 = vector.broadcast %cst_243 : f32 to vector<8x128xf32>
    %385 = arith.mulf %384, %383 : vector<8x128xf32>
    %c1_244 = arith.constant 1 : index
    %c1_245 = arith.constant 1 : index
    %386 = memref.load %arg1[%c1_244, %c1_245] : memref<2x3xf32, #tpu.memory_space<smem>>
    %cst_246 = arith.constant 1.000000e+00 : f32
    %387 = arith.subf %386, %cst_246 : f32
    %c1_247 = arith.constant 1 : index
    %c0_248 = arith.constant 0 : index
    %388 = memref.load %arg1[%c1_247, %c0_248] : memref<2x3xf32, #tpu.memory_space<smem>>
    %cst_249 = arith.constant 1.000000e+00 : f32
    %389 = arith.subf %388, %cst_249 : f32
    %390 = arith.subf %375, %381 : vector<8x128xf32>
    %cst_250 = arith.constant 0.000000e+00 : f32
    %391 = vector.broadcast %cst_250 : f32 to vector<8x128xf32>
    %392 = arith.maximumf %391, %390 : vector<8x128xf32>
    %393 = vector.broadcast %387 : f32 to vector<8x128xf32>
    %394 = arith.minimumf %393, %392 : vector<8x128xf32>
    %c1_251 = arith.constant 1 : index
    %c0_252 = arith.constant 0 : index
    %c0_253 = arith.constant 0 : index
    %c0_254 = arith.constant 0 : index
    %395 = vector.load %arg5[%c1_251, %c0_252, %c0_253, %c0_254] : memref<2x4x8x128xf32, #tpu.memory_space<vmem>>, vector<1x1x8x128xf32>
    %396 = vector.shape_cast %395 : vector<1x1x8x128xf32> to vector<8x128xf32>
    %397 = vector.shape_cast %394 : vector<8x128xf32> to vector<1x1x8x128xf32>
    tpu.vector_store %arg5[%c1_251, %c0_252, %c0_253, %c0_254], %397 {strides = array<i32>} : memref<2x4x8x128xf32, #tpu.memory_space<vmem>>, vector<1x1x8x128xf32>,
    %398 = arith.subf %377, %385 : vector<8x128xf32>
    %cst_255 = arith.constant 0.000000e+00 : f32
    %399 = vector.broadcast %cst_255 : f32 to vector<8x128xf32>
    %400 = arith.maximumf %399, %398 : vector<8x128xf32>
    %401 = vector.broadcast %389 : f32 to vector<8x128xf32>
    %402 = arith.minimumf %401, %400 : vector<8x128xf32>
    %c1_256 = arith.constant 1 : index
    %c1_257 = arith.constant 1 : index
    %c0_258 = arith.constant 0 : index
    %c0_259 = arith.constant 0 : index
    %403 = vector.load %arg5[%c1_256, %c1_257, %c0_258, %c0_259] : memref<2x4x8x128xf32, #tpu.memory_space<vmem>>, vector<1x1x8x128xf32>
    %404 = vector.shape_cast %403 : vector<1x1x8x128xf32> to vector<8x128xf32>
    %405 = vector.shape_cast %402 : vector<8x128xf32> to vector<1x1x8x128xf32>
    tpu.vector_store %arg5[%c1_256, %c1_257, %c0_258, %c0_259], %405 {strides = array<i32>} : memref<2x4x8x128xf32, #tpu.memory_space<vmem>>, vector<1x1x8x128xf32>,
    %406 = arith.addf %375, %381 : vector<8x128xf32>
    %cst_260 = arith.constant 0.000000e+00 : f32
    %407 = vector.broadcast %cst_260 : f32 to vector<8x128xf32>
    %408 = arith.maximumf %407, %406 : vector<8x128xf32>
    %409 = vector.broadcast %387 : f32 to vector<8x128xf32>
    %410 = arith.minimumf %409, %408 : vector<8x128xf32>
    %c1_261 = arith.constant 1 : index
    %c2_262 = arith.constant 2 : index
    %c0_263 = arith.constant 0 : index
    %c0_264 = arith.constant 0 : index
    %411 = vector.load %arg5[%c1_261, %c2_262, %c0_263, %c0_264] : memref<2x4x8x128xf32, #tpu.memory_space<vmem>>, vector<1x1x8x128xf32>
    %412 = vector.shape_cast %411 : vector<1x1x8x128xf32> to vector<8x128xf32>
    %413 = vector.shape_cast %410 : vector<8x128xf32> to vector<1x1x8x128xf32>
    tpu.vector_store %arg5[%c1_261, %c2_262, %c0_263, %c0_264], %413 {strides = array<i32>} : memref<2x4x8x128xf32, #tpu.memory_space<vmem>>, vector<1x1x8x128xf32>,
    %414 = arith.addf %377, %385 : vector<8x128xf32>
    %cst_265 = arith.constant 0.000000e+00 : f32
    %415 = vector.broadcast %cst_265 : f32 to vector<8x128xf32>
    %416 = arith.maximumf %415, %414 : vector<8x128xf32>
    %417 = vector.broadcast %389 : f32 to vector<8x128xf32>
    %418 = arith.minimumf %417, %416 : vector<8x128xf32>
    %c1_266 = arith.constant 1 : index
    %c3_267 = arith.constant 3 : index
    %c0_268 = arith.constant 0 : index
    %c0_269 = arith.constant 0 : index
    %419 = vector.load %arg5[%c1_266, %c3_267, %c0_268, %c0_269] : memref<2x4x8x128xf32, #tpu.memory_space<vmem>>, vector<1x1x8x128xf32>
    %420 = vector.shape_cast %419 : vector<1x1x8x128xf32> to vector<8x128xf32>
    %421 = vector.shape_cast %418 : vector<8x128xf32> to vector<1x1x8x128xf32>
    tpu.vector_store %arg5[%c1_266, %c3_267, %c0_268, %c0_269], %421 {strides = array<i32>} : memref<2x4x8x128xf32, #tpu.memory_space<vmem>>, vector<1x1x8x128xf32>,
    return
  }
  func.func @transform_0(%arg0: i32) -> (i32, i32) {
    %c0_i32 = arith.constant 0 : i32
    %c0_i32_0 = arith.constant 0 : i32
    %c0_i32_1 = arith.constant 0 : i32
    return %c0_i32, %c0_i32_0 : i32, i32
  }
  func.func @transform_1(%arg0: i32) -> (i32, i32) {
    %c0_i32 = arith.constant 0 : i32
    %c0_i32_0 = arith.constant 0 : i32
    %c0_i32_1 = arith.constant 0 : i32
    return %c0_i32, %c0_i32_0 : i32, i32
  }
  func.func @transform_2(%arg0: i32) -> (i32, i32, i32) {
    %c0_i32 = arith.constant 0 : i32
    %c0_i32_0 = arith.constant 0 : i32
    %c0_i32_1 = arith.constant 0 : i32
    return %c0_i32, %arg0, %c0_i32_0 : i32, i32, i32
  }
  func.func @transform_3(%arg0: i32) -> (i32, i32, i32, i32) {
    %c0_i32 = arith.constant 0 : i32
    %c0_i32_0 = arith.constant 0 : i32
    %c0_i32_1 = arith.constant 0 : i32
    %c0_i32_2 = arith.constant 0 : i32
    return %c0_i32, %c0_i32_0, %arg0, %c0_i32_1 : i32, i32, i32, i32
  }
  func.func @transform_4(%arg0: i32) -> (i32, i32, i32, i32) {
    %c0_i32 = arith.constant 0 : i32
    %c0_i32_0 = arith.constant 0 : i32
    %c0_i32_1 = arith.constant 0 : i32
    %c0_i32_2 = arith.constant 0 : i32
    return %c0_i32, %c0_i32_0, %arg0, %c0_i32_1 : i32, i32, i32, i32
  }
}

</mosaic_0001>

<llo_original>
// kernel: tpu_custom_call.1
$region0: #{tpu_custom_call.1}
  #allocation0 [shape = 'u32[]', space=smem, size = 0x4, offset = 0x4, fixed_abs, tag = 'smem constant byte address 0x4 - core index']
  #allocation1 [shape = 'u32[144,128]{1,0:T(1,128)}', space=vmem, size = 0x12000, scoped, tag = 'internal scratch']
  %s0 = inlined_call_operand.hbm [shape: f32[2,3], index: 0, kind: input, shape index: {}]
  %s1 = inlined_call_operand.hbm [shape: f32[4,9], index: 1, kind: input, shape index: {}]
  %s2 = inlined_call_operand.hbm [shape: s32[2,8,128], index: 2, kind: input, shape index: {}]
  %s3 = inlined_call_operand.hbm [shape: f32[2,4,8,128], index: 3, kind: input, shape index: {}]
  %s4 = inlined_call_operand.hbm [shape: f32[2,4,8,128], index: 4, kind: output, shape index: {}]
  %s5 = sld [smem:[#allocation0]]
  $region42: #{tpu_custom_call.1} parent=0
    _
  %s7 = ssub.s32 1, %s5
  %s8 = scalar_select 0, %s7, %s5
  $region1: #{tpu_custom_call.1} parent=0
    #allocation2 [shape = 'u8[1024]{0}', space=smem, size = 0x400, scoped, tag = 'input window, operand 0, single buffered']
    #allocation3 [shape = 's32[1]{0}', space=sflag, size = 0x4, scoped, tag = 'scoped memory for tpu_custom_call.1']
    #allocation4 [shape = 's32[1]{0}', space=sflag, size = 0x4, scoped, tag = 'scoped memory for tpu_custom_call.1']
    #allocation5 [shape = 's32[1]{0}', space=sflag, size = 0x4, scoped, tag = 'scoped memory for tpu_custom_call.1']
    #allocation6 [shape = 'u8[2048]{0}', space=smem, size = 0x800, scoped, tag = 'input window, operand 1, single buffered']
    #allocation7 [shape = 's32[1]{0}', space=sflag, size = 0x4, scoped, tag = 'scoped memory for tpu_custom_call.1']
    #allocation8 [shape = 'u8[8192]{0}', space=vmem, size = 0x2000, scoped, tag = 'input window, operand 2, single buffered']
    #allocation9 [shape = 'u8[32768]{0}', space=vmem, size = 0x8000, scoped, tag = 'input window, operand 3, single buffered']
    #allocation10 [shape = 's32[1]{0}', space=sflag, size = 0x4, scoped, tag = 'scoped memory for tpu_custom_call.1']
    #allocation11 [shape = 'u8[32768]{0}', space=vmem, size = 0x8000, scoped, tag = 'output window, operand 0, single buffered']
    %9 = vsyncpa [#allocation5], 0
    %10 = vsyncpa [#allocation7], 0
    %11 = vsyncpa [#allocation3], 0
    %12 = vsyncpa [#allocation10], 0
    %13 = vsyncpa [#allocation4], 0
    // Predicated region
    $region2: #{tpu_custom_call.1} parent=1 // pred_check
      _
    $region3: #{tpu_custom_call.1} parent=1 // pred_check_branch
      %15 = sbr.rel (0) target = $region5
    $region4: #{tpu_custom_call.1} parent=1 // pred_region
      %s17 = ssub.s32 32, 32
      %18 = vsyncadd [#allocation5], %s17
      %21 = dma.hbm_to_smem %s0, 32, [#allocation2], [#allocation5]
    $region5: #{tpu_custom_call.1} parent=1 // pred_fallthru
      _
    // Predicated region
    $region6: #{tpu_custom_call.1} parent=1 // pred_check
      _
    $region7: #{tpu_custom_call.1} parent=1 // pred_check_branch
      %23 = sbr.rel (0) target = $region9
    $region8: #{tpu_custom_call.1} parent=1 // pred_region
      %s25 = ssub.s32 64, 64
      %26 = vsyncadd [#allocation7], %s25
      %29 = dma.hbm_to_smem %s1, 64, [#allocation6], [#allocation7]
    $region9: #{tpu_custom_call.1} parent=1 // pred_fallthru
      _
    // Predicated region
    $region10: #{tpu_custom_call.1} parent=1 // pred_check
      _
    $region11: #{tpu_custom_call.1} parent=1 // pred_check_branch
      %31 = sbr.rel (0) target = $region13
    $region12: #{tpu_custom_call.1} parent=1 // pred_region
      %s33 = ssub.s32 256, 256
      %34 = vsyncadd [#allocation3], %s33
      %s35 = sshll.u32 [#allocation8], 4
      %s36 = int_to_ptr.vmem [resolvable:$true] %s35
      %41 = dma.hbm_to_vmem [thread:$0]  %s2, 256, %s36, [#allocation3], 128, 128, 8
    $region13: #{tpu_custom_call.1} parent=1 // pred_fallthru
      _
    // Predicated region
    $region14: #{tpu_custom_call.1} parent=1 // pred_check
      _
    $region15: #{tpu_custom_call.1} parent=1 // pred_check_branch
      %43 = sbr.rel (0) target = $region17
    $region16: #{tpu_custom_call.1} parent=1 // pred_region
      %s45 = ssub.s32 1024, 1024
      %46 = vsyncadd [#allocation10], %s45
      %s47 = sshll.u32 [#allocation9], 4
      %s48 = int_to_ptr.vmem [resolvable:$true] %s47
      %53 = dma.hbm_to_vmem [thread:$0]  %s3, 1024, %s48, [#allocation10], 128, 128, 8
    $region17: #{tpu_custom_call.1} parent=1 // pred_fallthru
      _
    // Predicated region
    $region18: #{tpu_custom_call.1} parent=1 // pred_check
      _
    $region19: #{tpu_custom_call.1} parent=1 // pred_check_branch
      %55 = sbr.rel (0) target = $region21
    $region20: #{tpu_custom_call.1} parent=1 // pred_region
      %56 = dma.done [#allocation5], 32
    $region21: #{tpu_custom_call.1} parent=1 // pred_fallthru
      _
    // Predicated region
    $region22: #{tpu_custom_call.1} parent=1 // pred_check
      _
    $region23: #{tpu_custom_call.1} parent=1 // pred_check_branch
      %58 = sbr.rel (0) target = $region25
    $region24: #{tpu_custom_call.1} parent=1 // pred_region
      %59 = dma.done [#allocation7], 64
    $region25: #{tpu_custom_call.1} parent=1 // pred_fallthru
      _
    // Predicated region
    $region26: #{tpu_custom_call.1} parent=1 // pred_check
      _
    $region27: #{tpu_custom_call.1} parent=1 // pred_check_branch
      %61 = sbr.rel (0) target = $region29
    $region28: #{tpu_custom_call.1} parent=1 // pred_region
      %62 = dma.done [#allocation3], 256
    $region29: #{tpu_custom_call.1} parent=1 // pred_fallthru
      _
    // Predicated region
    $region30: #{tpu_custom_call.1} parent=1 // pred_check
      _
    $region31: #{tpu_custom_call.1} parent=1 // pred_check_branch
      %64 = sbr.rel (0) target = $region33
    $region32: #{tpu_custom_call.1} parent=1 // pred_region
      %65 = dma.done [#allocation10], 1024
    $region33: #{tpu_custom_call.1} parent=1 // pred_fallthru
      _
    %66 = sfence
    %v67 = vld [vmem:[#allocation8] sm:$0xff]
    %v68 = vcvt.s32.f32 %v67
    %v69 = vadd.f32 %v68, 0.5
    %v70 = vmul.f32 %v69, 0.00390625
    %v71 = vfloor.f32 %v70
    %v72 = vmul.f32 %v71, 256.0
    %v73 = vsub.f32 %v68, %v72
    %v74 = vadd.f32 %v73, 0.5
    %v75 = vmul.f32 %v74, 0.0625
    %v76 = vfloor.f32 %v75
    %v77 = vmul.f32 %v76, 16.0
    %v78 = vsub.f32 %v73, %v77
    %vm79 = vcmp.eq.f32.partialorder %v71, 0.0
    %s80 = sld [smem:[#allocation6]]
    %v81 = vstv %s80
    %v82 = vsel %vm79, %v81, 0.0
    %s83 = sld [smem:[#allocation6 + $0x80]]
    %v84 = vstv %s83
    %v85 = vsel %vm79, %v84, 0.0
    %s86 = sld [smem:[#allocation6 + $0x100]]
    %v87 = vstv %s86
    %v88 = vsel %vm79, %v87, 0.0
    %s89 = sld [smem:[#allocation6 + $0x180]]
    %v90 = vstv %s89
    %v91 = vsel %vm79, %v90, 0.0
    %vm92 = vcmp.eq.f32.partialorder %v71, 1.0
    %s93 = sld [smem:[#allocation6 + $0x1]]
    %v94 = vstv %s93
    %v95 = vsel %vm92, %v94, %v82
    %s96 = sld [smem:[#allocation6 + $0x81]]
    %v97 = vstv %s96
    %v98 = vsel %vm92, %v97, %v85
    %s99 = sld [smem:[#allocation6 + $0x101]]
    %v100 = vstv %s99
    %v101 = vsel %vm92, %v100, %v88
    %s102 = sld [smem:[#allocation6 + $0x181]]
    %v103 = vstv %s102
    %v104 = vsel %vm92, %v103, %v91
    %vm105 = vcmp.eq.f32.partialorder %v71, 2.0
    %s106 = sld [smem:[#allocation6 + $0x2]]
    %v107 = vstv %s106
    %v108 = vsel %vm105, %v107, %v95
    %s109 = sld [smem:[#allocation6 + $0x82]]
    %v110 = vstv %s109
    %v111 = vsel %vm105, %v110, %v98
    %s112 = sld [smem:[#allocation6 + $0x102]]
    %v113 = vstv %s112
    %v114 = vsel %vm105, %v113, %v101
    %s115 = sld [smem:[#allocation6 + $0x182]]
    %v116 = vstv %s115
    %v117 = vsel %vm105, %v116, %v104
    %vm118 = vcmp.eq.f32.partialorder %v71, 3.0
    %s119 = sld [smem:[#allocation6 + $0x3]]
    %v120 = vstv %s119
    %v121 = vsel %vm118, %v120, %v108
    %s122 = sld [smem:[#allocation6 + $0x83]]
    %v123 = vstv %s122
    %v124 = vsel %vm118, %v123, %v111
    %s125 = sld [smem:[#allocation6 + $0x103]]
    %v126 = vstv %s125
    %v127 = vsel %vm118, %v126, %v114
    %s128 = sld [smem:[#allocation6 + $0x183]]
    %v129 = vstv %s128
    %v130 = vsel %vm118, %v129, %v117
    %vm131 = vcmp.eq.f32.partialorder %v71, 4.0
    %s132 = sld [smem:[#allocation6 + $0x4]]
    %v133 = vstv %s132
    %v134 = vsel %vm131, %v133, %v121
    %s135 = sld [smem:[#allocation6 + $0x84]]
    %v136 = vstv %s135
    %v137 = vsel %vm131, %v136, %v124
    %s138 = sld [smem:[#allocation6 + $0x104]]
    %v139 = vstv %s138
    %v140 = vsel %vm131, %v139, %v127
    %s141 = sld [smem:[#allocation6 + $0x184]]
    %v142 = vstv %s141
    %v143 = vsel %vm131, %v142, %v130
    %vm144 = vcmp.eq.f32.partialorder %v71, 5.0
    %s145 = sld [smem:[#allocation6 + $0x5]]
    %v146 = vstv %s145
    %v147 = vsel %vm144, %v146, %v134
    %s148 = sld [smem:[#allocation6 + $0x85]]
    %v149 = vstv %s148
    %v150 = vsel %vm144, %v149, %v137
    %s151 = sld [smem:[#allocation6 + $0x105]]
    %v152 = vstv %s151
    %v153 = vsel %vm144, %v152, %v140
    %s154 = sld [smem:[#allocation6 + $0x185]]
    %v155 = vstv %s154
    %v156 = vsel %vm144, %v155, %v143
    %vm157 = vcmp.eq.f32.partialorder %v71, 6.0
    %s158 = sld [smem:[#allocation6 + $0x6]]
    %v159 = vstv %s158
    %v160 = vsel %vm157, %v159, %v147
    %s161 = sld [smem:[#allocation6 + $0x86]]
    %v162 = vstv %s161
    %v163 = vsel %vm157, %v162, %v150
    %s164 = sld [smem:[#allocation6 + $0x106]]
    %v165 = vstv %s164
    %v166 = vsel %vm157, %v165, %v153
    %s167 = sld [smem:[#allocation6 + $0x186]]
    %v168 = vstv %s167
    %v169 = vsel %vm157, %v168, %v156
    %vm170 = vcmp.eq.f32.partialorder %v71, 7.0
    %s171 = sld [smem:[#allocation6 + $0x7]]
    %v172 = vstv %s171
    %v173 = vsel %vm170, %v172, %v160
    %s174 = sld [smem:[#allocation6 + $0x87]]
    %v175 = vstv %s174
    %v176 = vsel %vm170, %v175, %v163
    %s177 = sld [smem:[#allocation6 + $0x107]]
    %v178 = vstv %s177
    %v179 = vsel %vm170, %v178, %v166
    %s180 = sld [smem:[#allocation6 + $0x187]]
    %v181 = vstv %s180
    %v182 = vsel %vm170, %v181, %v169
    %vm183 = vcmp.eq.f32.partialorder %v71, 8.0
    %s184 = sld [smem:[#allocation6 + $0x8]]
    %v185 = vstv %s184
    %v186 = vsel %vm183, %v185, %v173
    %s187 = sld [smem:[#allocation6 + $0x88]]
    %v188 = vstv %s187
    %v189 = vsel %vm183, %v188, %v176
    %s190 = sld [smem:[#allocation6 + $0x108]]
    %v191 = vstv %s190
    %v192 = vsel %vm183, %v191, %v179
    %s193 = sld [smem:[#allocation6 + $0x188]]
    %v194 = vstv %s193
    %v195 = vsel %vm183, %v194, %v182
    %v196 = vmul.f32 %v78, 16.0
    %v197 = vadd.f32 %v192, %v196
    %v198 = vadd.f32 %v195, %v77
    %v199 = vld [vmem:[#allocation9] sm:$0xff]
    %s200 = scalar_lea.vmem [#allocation9], 8
    %v201 = vld [vmem:[%s200] sm:$0xff]
    %s202 = scalar_lea.vmem [#allocation9], 16
    %v203 = vld [vmem:[%s202] sm:$0xff]
    %s204 = scalar_lea.vmem [#allocation9], 24
    %v205 = vld [vmem:[%s204] sm:$0xff]
    %v206 = vmul.f32 %v199, %v186
    %v207 = vadd.f32 %v206, %v197
    %v208 = vmul.f32 %v201, %v189
    %v209 = vadd.f32 %v208, %v198
    %v210 = vmul.f32 %v203, 1.442695
    %v211 = vpow.pop %v210
    %v212 = vmul.f32 %v211, %v186
    %v213 = vmul.f32 %v212, 0.5
    %v214 = vmul.f32 %v205, 1.442695
    %v215 = vpow.pop %v214
    %v216 = vmul.f32 %v215, %v189
    %v217 = vmul.f32 %v216, 0.5
    %s218 = sld [smem:[#allocation2 + $0x1]]
    %s219 = ssub.f32 %s218, 1.0
    %s220 = sld [smem:[#allocation2]]
    %s221 = ssub.f32 %s220, 1.0
    %v222 = vsub.f32 %v207, %v213
    %v223 = vmax.f32 %v222, 0.0
    %v224 = vstv %s219
    %v225 = vmin.f32 %v224, %v223
    %226 = vst [vmem:[#allocation11] sm:$0xff] %v225
    %v227 = vsub.f32 %v209, %v217
    %v228 = vmax.f32 %v227, 0.0
    %v229 = vstv %s221
    %v230 = vmin.f32 %v229, %v228
    %s231 = scalar_lea.vmem [#allocation11], 8
    %232 = vst [vmem:[%s231] sm:$0xff] %v230
    %v233 = vadd.f32 %v207, %v213
    %v234 = vmax.f32 %v233, 0.0
    %v235 = vmin.f32 %v224, %v234
    %s236 = scalar_lea.vmem [#allocation11], 16
    %237 = vst [vmem:[%s236] sm:$0xff] %v235
    %v238 = vadd.f32 %v209, %v217
    %v239 = vmax.f32 %v238, 0.0
    %v240 = vmin.f32 %v229, %v239
    %s241 = scalar_lea.vmem [#allocation11], 24
    %242 = vst [vmem:[%s241] sm:$0xff] %v240
    %s243 = scalar_lea.vmem [#allocation8], 8
    %v244 = vld [vmem:[%s243] sm:$0xff]
    %v245 = vcvt.s32.f32 %v244
    %v246 = vadd.f32 %v245, 0.5
    %v247 = vmul.f32 %v246, 0.00390625
    %v248 = vfloor.f32 %v247
    %v249 = vmul.f32 %v248, 256.0
    %v250 = vsub.f32 %v245, %v249
    %v251 = vadd.f32 %v250, 0.5
    %v252 = vmul.f32 %v251, 0.0625
    %v253 = vfloor.f32 %v252
    %v254 = vmul.f32 %v253, 16.0
    %v255 = vsub.f32 %v250, %v254
    %vm256 = vcmp.eq.f32.partialorder %v248, 0.0
    %s257 = sld [smem:[#allocation6]]
    %v258 = vstv %s257
    %v259 = vsel %vm256, %v258, 0.0
    %s260 = sld [smem:[#allocation6 + $0x80]]
    %v261 = vstv %s260
    %v262 = vsel %vm256, %v261, 0.0
    %s263 = sld [smem:[#allocation6 + $0x100]]
    %v264 = vstv %s263
    %v265 = vsel %vm256, %v264, 0.0
    %s266 = sld [smem:[#allocation6 + $0x180]]
    %v267 = vstv %s266
    %v268 = vsel %vm256, %v267, 0.0
    %vm269 = vcmp.eq.f32.partialorder %v248, 1.0
    %s270 = sld [smem:[#allocation6 + $0x1]]
    %v271 = vstv %s270
    %v272 = vsel %vm269, %v271, %v259
    %s273 = sld [smem:[#allocation6 + $0x81]]
    %v274 = vstv %s273
    %v275 = vsel %vm269, %v274, %v262
    %s276 = sld [smem:[#allocation6 + $0x101]]
    %v277 = vstv %s276
    %v278 = vsel %vm269, %v277, %v265
    %s279 = sld [smem:[#allocation6 + $0x181]]
    %v280 = vstv %s279
    %v281 = vsel %vm269, %v280, %v268
    %vm282 = vcmp.eq.f32.partialorder %v248, 2.0
    %s283 = sld [smem:[#allocation6 + $0x2]]
    %v284 = vstv %s283
    %v285 = vsel %vm282, %v284, %v272
    %s286 = sld [smem:[#allocation6 + $0x82]]
    %v287 = vstv %s286
    %v288 = vsel %vm282, %v287, %v275
    %s289 = sld [smem:[#allocation6 + $0x102]]
    %v290 = vstv %s289
    %v291 = vsel %vm282, %v290, %v278
    %s292 = sld [smem:[#allocation6 + $0x182]]
    %v293 = vstv %s292
    %v294 = vsel %vm282, %v293, %v281
    %vm295 = vcmp.eq.f32.partialorder %v248, 3.0
    %s296 = sld [smem:[#allocation6 + $0x3]]
    %v297 = vstv %s296
    %v298 = vsel %vm295, %v297, %v285
    %s299 = sld [smem:[#allocation6 + $0x83]]
    %v300 = vstv %s299
    %v301 = vsel %vm295, %v300, %v288
    %s302 = sld [smem:[#allocation6 + $0x103]]
    %v303 = vstv %s302
    %v304 = vsel %vm295, %v303, %v291
    %s305 = sld [smem:[#allocation6 + $0x183]]
    %v306 = vstv %s305
    %v307 = vsel %vm295, %v306, %v294
    %vm308 = vcmp.eq.f32.partialorder %v248, 4.0
    %s309 = sld [smem:[#allocation6 + $0x4]]
    %v310 = vstv %s309
    %v311 = vsel %vm308, %v310, %v298
    %s312 = sld [smem:[#allocation6 + $0x84]]
    %v313 = vstv %s312
    %v314 = vsel %vm308, %v313, %v301
    %s315 = sld [smem:[#allocation6 + $0x104]]
    %v316 = vstv %s315
    %v317 = vsel %vm308, %v316, %v304
    %s318 = sld [smem:[#allocation6 + $0x184]]
    %v319 = vstv %s318
    %v320 = vsel %vm308, %v319, %v307
    %vm321 = vcmp.eq.f32.partialorder %v248, 5.0
    %s322 = sld [smem:[#allocation6 + $0x5]]
    %v323 = vstv %s322
    %v324 = vsel %vm321, %v323, %v311
    %s325 = sld [smem:[#allocation6 + $0x85]]
    %v326 = vstv %s325
    %v327 = vsel %vm321, %v326, %v314
    %s328 = sld [smem:[#allocation6 + $0x105]]
    %v329 = vstv %s328
    %v330 = vsel %vm321, %v329, %v317
    %s331 = sld [smem:[#allocation6 + $0x185]]
    %v332 = vstv %s331
    %v333 = vsel %vm321, %v332, %v320
    %vm334 = vcmp.eq.f32.partialorder %v248, 6.0
    %s335 = sld [smem:[#allocation6 + $0x6]]
    %v336 = vstv %s335
    %v337 = vsel %vm334, %v336, %v324
    %s338 = sld [smem:[#allocation6 + $0x86]]
    %v339 = vstv %s338
    %v340 = vsel %vm334, %v339, %v327
    %s341 = sld [smem:[#allocation6 + $0x106]]
    %v342 = vstv %s341
    %v343 = vsel %vm334, %v342, %v330
    %s344 = sld [smem:[#allocation6 + $0x186]]
    %v345 = vstv %s344
    %v346 = vsel %vm334, %v345, %v333
    %vm347 = vcmp.eq.f32.partialorder %v248, 7.0
    %s348 = sld [smem:[#allocation6 + $0x7]]
    %v349 = vstv %s348
    %v350 = vsel %vm347, %v349, %v337
    %s351 = sld [smem:[#allocation6 + $0x87]]
    %v352 = vstv %s351
    %v353 = vsel %vm347, %v352, %v340
    %s354 = sld [smem:[#allocation6 + $0x107]]
    %v355 = vstv %s354
    %v356 = vsel %vm347, %v355, %v343
    %s357 = sld [smem:[#allocation6 + $0x187]]
    %v358 = vstv %s357
    %v359 = vsel %vm347, %v358, %v346
    %vm360 = vcmp.eq.f32.partialorder %v248, 8.0
    %s361 = sld [smem:[#allocation6 + $0x8]]
    %v362 = vstv %s361
    %v363 = vsel %vm360, %v362, %v350
    %s364 = sld [smem:[#allocation6 + $0x88]]
    %v365 = vstv %s364
    %v366 = vsel %vm360, %v365, %v353
    %s367 = sld [smem:[#allocation6 + $0x108]]
    %v368 = vstv %s367
    %v369 = vsel %vm360, %v368, %v356
    %s370 = sld [smem:[#allocation6 + $0x188]]
    %v371 = vstv %s370
    %v372 = vsel %vm360, %v371, %v359
    %v373 = vmul.f32 %v255, 16.0
    %v374 = vadd.f32 %v369, %v373
    %v375 = vadd.f32 %v372, %v254
    %s376 = scalar_lea.vmem [#allocation9], 32
    %v377 = vld [vmem:[%s376] sm:$0xff]
    %s378 = scalar_lea.vmem [#allocation9], 40
    %v379 = vld [vmem:[%s378] sm:$0xff]
    %s380 = scalar_lea.vmem [#allocation9], 48
    %v381 = vld [vmem:[%s380] sm:$0xff]
    %s382 = scalar_lea.vmem [#allocation9], 56
    %v383 = vld [vmem:[%s382] sm:$0xff]
    %v384 = vmul.f32 %v377, %v363
    %v385 = vadd.f32 %v384, %v374
    %v386 = vmul.f32 %v379, %v366
    %v387 = vadd.f32 %v386, %v375
    %v388 = vmul.f32 %v381, 1.442695
    %v389 = vpow.pop %v388
    %v390 = vmul.f32 %v389, %v363
    %v391 = vmul.f32 %v390, 0.5
    %v392 = vmul.f32 %v383, 1.442695
    %v393 = vpow.pop %v392
    %v394 = vmul.f32 %v393, %v366
    %v395 = vmul.f32 %v394, 0.5
    %s396 = sld [smem:[#allocation2 + $0x81]]
    %s397 = ssub.f32 %s396, 1.0
    %s398 = sld [smem:[#allocation2 + $0x80]]
    %s399 = ssub.f32 %s398, 1.0
    %v400 = vsub.f32 %v385, %v391
    %v401 = vmax.f32 %v400, 0.0
    %v402 = vstv %s397
    %v403 = vmin.f32 %v402, %v401
    %s404 = scalar_lea.vmem [#allocation11], 32
    %405 = vst [vmem:[%s404] sm:$0xff] %v403
    %v406 = vsub.f32 %v387, %v395
    %v407 = vmax.f32 %v406, 0.0
    %v408 = vstv %s399
    %v409 = vmin.f32 %v408, %v407
    %s410 = scalar_lea.vmem [#allocation11], 40
    %411 = vst [vmem:[%s410] sm:$0xff] %v409
    %v412 = vadd.f32 %v385, %v391
    %v413 = vmax.f32 %v412, 0.0
    %v414 = vmin.f32 %v402, %v413
    %s415 = scalar_lea.vmem [#allocation11], 48
    %416 = vst [vmem:[%s415] sm:$0xff] %v414
    %v417 = vadd.f32 %v387, %v395
    %v418 = vmax.f32 %v417, 0.0
    %v419 = vmin.f32 %v408, %v418
    %s420 = scalar_lea.vmem [#allocation11], 56
    %421 = vst [vmem:[%s420] sm:$0xff] %v419
    // Predicated region
    $region34: #{tpu_custom_call.1} parent=1 // pred_check
      _
    $region35: #{tpu_custom_call.1} parent=1 // pred_check_branch
      %423 = sbr.rel (0) target = $region37
    $region36: #{tpu_custom_call.1} parent=1 // pred_region
      %s425 = ssub.s32 1024, 1024
      %426 = vsyncadd [#allocation4], %s425
      %s427 = sshll.u32 [#allocation11], 4
      %s428 = int_to_ptr.vmem [resolvable:$true] %s427
      %433 = dma.vmem_to_hbm [thread:$0]  %s428, 1024, %s4, [#allocation4], 128, 128, 8
    $region37: #{tpu_custom_call.1} parent=1 // pred_fallthru
      _
    // Predicated region
    $region38: #{tpu_custom_call.1} parent=1 // pred_check
      _
    $region39: #{tpu_custom_call.1} parent=1 // pred_check_branch
      %435 = sbr.rel (0) target = $region41
    $region40: #{tpu_custom_call.1} parent=1 // pred_region
      %436 = dma.done [#allocation4], 1024
    $region41: #{tpu_custom_call.1} parent=1 // pred_fallthru
      _
    %437 = vsyncpa [#allocation3], 1
    %438 = vsyncpa [#allocation10], 1
    %439 = vsyncpa [#allocation4], 1
    %440 = vsyncpa [#allocation5], 1
    %441 = vsyncpa [#allocation7], 1

</llo_original>
